<compile_context>
chip_gen: v5e
topology: v5e:2x2
jax: 0.10.0
libtpu: 0.0.40
codegen_flags: <defaults>
</compile_context>

<pallas_src>
import numpy as np
import jax
import jax.numpy as jnp
from jax.experimental import pallas as pl
from jax.experimental.pallas import tpu as pltpu

# Module defaults: dim=2, n_flows=3, hidden_dim=8. Kernel is specialized to dim=2
# (coupling half == 1 scalar), the module's default configuration.
DIM = 2
N_FLOWS = 3
HIDDEN = 8
H2 = 2 * HIDDEN            # fused (t, s) net width
N_NETS = N_FLOWS * 4       # individual FCNNs
N_HALVES = N_FLOWS * 2     # fused coupling halves
MAX_TILE = 1024            # large tiles; per-grid-step overhead ~0.35us


def nfds_forward_kernel(x_ref, xs_ref, cols_ref, w2f_ref, w2j_ref, w3_ref, b3_ref,
                        out_ref):
    f32 = jnp.float32
    x = x_ref[...]          # (2, TB)  batch on lanes
    xs = xs_ref[...]        # (2, TB)
    tb = x.shape[1]

    # Forward flow is evaluated once for x and x_star together (lane concat);
    # everything derivative-related below is restricted to the first tb (x) lanes.
    z = jnp.concatenate([x, xs], axis=1)      # (2, 2*TB)
    lower = z[0:1, :]
    upper = z[1:2, :]

    a_saved = []    # per-half off-diagonal Jacobian entry, x lanes  (1, TB)
    es_saved = []   # per-half exp(s) on the x lanes                 (1, TB)

    for h in range(N_HALVES):
        r0 = h * H2
        c = cols_ref[r0:r0 + H2, :]           # (2H, 3): [w1 | b1 | b2]
        w1c = c[:, 0:1]
        b1c = c[:, 1:2]
        b2c = c[:, 2:3]
        w2f = w2f_ref[r0:r0 + H2, :]          # (2H, 2H) block-diag [t ; s] (= W2^T)
        w2j = w2j_ref[r0:r0 + H2, :]          # (2H, 2H), columns pre-scaled by w1
        w3p = w3_ref[8 * h:8 * h + 8, :]      # (8, 2H): rows 0,1 = [w3_t|0], [0|w3_s]
        b3c = b3_ref[8 * h:8 * h + 8, :]      # (8, 1):  rows 0,1 = b3_t, b3_s

        zin = lower if (h % 2 == 0) else upper

        # ---- fused t/s net forward on all 2*TB lanes (layers 2,3 on the MXU) ----
        h1 = jnp.tanh(w1c * zin + b1c)                                      # (2H, 2TB)
        h2 = jnp.tanh(jnp.dot(w2f, h1, preferred_element_type=f32) + b2c)   # (2H, 2TB)
        ts = jnp.dot(w3p, h2, preferred_element_type=f32) + b3c             # (8, 2TB)
        t = ts[0:1, :]
        es = jnp.exp(ts[1:2, :])                                            # (1, 2TB)

        # ---- analytic d{t,s}/dz on the x lanes only (no concat copy) ----
        h1x = h1[:, :tb]
        h2x = h2[:, :tb]
        g1 = 1.0 - h1x * h1x                                                # (2H, TB)
        u = jnp.dot(w2j, g1, preferred_element_type=f32)                    # (2H, TB)
        g2 = (1.0 - h2x * h2x) * u                                          # (2H, TB)
        jts = jnp.dot(w3p, g2, preferred_element_type=f32)                  # (8, TB)
        jt = jts[0:1, :]
        js = jts[1:2, :]

        if h % 2 == 0:      # upper' = t1(lower) + upper * exp(s1(lower))
            ue = upper * es
            a = jt + ue[:, :tb] * js
            upper = t + ue
        else:               # lower' = t2(upper) + lower * exp(s2(upper))
            le = lower * es
            a = jt + le[:, :tb] * js
            lower = t + le
        a_saved.append(a)
        es_saved.append(es[:, :tb])

    # out = phi_jac(x)^T @ (-2 * (phi(x) - phi(x_star)))
    # Reverse-mode (VJP) accumulation: out = J_1^T @ ... @ J_{2F}^T @ pg, where
    #   half A Jacobian  J = [[1, 0], [a, es]]   (rows=(lower',upper'), cols=(lower,upper))
    #   half B Jacobian  J = [[es, a], [0, 1]]
    v0 = -2.0 * (lower[:, :tb] - lower[:, tb:])
    v1 = -2.0 * (upper[:, :tb] - upper[:, tb:])
    for h in range(N_HALVES - 1, -1, -1):
        a = a_saved[h]
        es = es_saved[h]
        if h % 2 == 0:
            v0, v1 = v0 + a * v1, es * v1
        else:
            v0, v1 = es * v0, a * v0 + v1

    out_ref[...] = jnp.concatenate([v0, v1], axis=0)      # (2, TB), lane-dense store


def pack_params(params):
    """Pack per-net params (w1,b1,W2,b2,w3,b3) into lane-aligned resident slabs for
    the fused-half kernel.  Net index = 4*flow + {0:t1, 1:s1, 2:t2, 3:s2}."""
    w1_all, b1_all, W2_all, b2_all, w3_all, b3_all = [
        jnp.asarray(p, jnp.float32) for p in params]
    cols_blocks, w2f_blocks, w2j_blocks, w3_blocks, b3_blocks = [], [], [], [], []
    zero_hh = jnp.zeros((HIDDEN, HIDDEN), jnp.float32)
    zero_h = jnp.zeros((HIDDEN,), jnp.float32)
    for h in range(N_HALVES):
        f, half = divmod(h, 2)
        ti = 4 * f + (0 if half == 0 else 2)   # t-net
        si = ti + 1                            # s-net
        w1f = jnp.concatenate([w1_all[ti], w1_all[si]])                  # (2H,)
        b1f = jnp.concatenate([b1_all[ti], b1_all[si]])
        b2f = jnp.concatenate([b2_all[ti], b2_all[si]])
        cols_blocks.append(jnp.stack([w1f, b1f, b2f], axis=1))           # (2H, 3)
        top = jnp.concatenate([W2_all[ti].T, zero_hh], axis=1)           # (H, 2H)
        bot = jnp.concatenate([zero_hh, W2_all[si].T], axis=1)           # (H, 2H)
        w2f_block = jnp.concatenate([top, bot], axis=0)                  # (2H, 2H)
        w2f_blocks.append(w2f_block)
        # Jacobian weight slab: W2^T @ diag(w1) so it consumes g1 = 1 - h1^2 directly.
        w2j_blocks.append(w2f_block * w1f[None, :])
        w3_block = jnp.zeros((8, H2), jnp.float32)
        w3_block = w3_block.at[0].set(jnp.concatenate([w3_all[ti], zero_h]))
        w3_block = w3_block.at[1].set(jnp.concatenate([zero_h, w3_all[si]]))
        w3_blocks.append(w3_block)                                       # (8, 2H)
        b3_block = jnp.zeros((8, 1), jnp.float32)
        b3_block = b3_block.at[0, 0].set(b3_all[ti, 0]).at[1, 0].set(b3_all[si, 0])
        b3_blocks.append(b3_block)                                       # (8, 1)
    cols_p = jnp.concatenate(cols_blocks, axis=0)    # (N_HALVES*2H, 3)
    w2f_p = jnp.concatenate(w2f_blocks, axis=0)      # (N_HALVES*2H, 2H)
    w2j_p = jnp.concatenate(w2j_blocks, axis=0)      # (N_HALVES*2H, 2H)
    w3_p = jnp.concatenate(w3_blocks, axis=0)        # (N_HALVES*8, 2H)
    b3_p = jnp.concatenate(b3_blocks, axis=0)        # (N_HALVES*8, 1)
    return cols_p, w2f_p, w2j_p, w3_p, b3_p


def _pick_tile(bp):
    """bp is a multiple of 128.  Largest lane-aligned tile <= MAX_TILE that divides
    bp while keeping >= 2 grid steps when possible (keeps both v7x TCs busy)."""
    n = bp // 128
    best = 128
    m = 1
    while m <= n and m * 128 <= MAX_TILE:
        if n % m == 0 and (n // m >= 2 or n == 1):
            best = m * 128
        m += 1
    return best


def nfds_forward(x, x_star, params):
    B = x.shape[0]
    cols_p, w2f_p, w2j_p, w3_p, b3_p = pack_params(params)
    xT = jnp.asarray(x, jnp.float32).T        # (2, B): batch on lanes
    xsT = jnp.asarray(x_star, jnp.float32).T
    Bp = ((B + 127) // 128) * 128             # pad ragged batches to lane alignment
    if Bp != B:
        pad = ((0, 0), (0, Bp - B))
        xT = jnp.pad(xT, pad)
        xsT = jnp.pad(xsT, pad)
    tb = _pick_tile(Bp)
    grid = (Bp // tb,)
    batched = pl.BlockSpec((DIM, tb), lambda i: (0, i))
    resident = lambda a: pl.BlockSpec(a.shape, lambda i: (0, 0))
    cost = pl.CostEstimate(
        flops=int(12_000 * Bp),
        transcendentals=int(400 * Bp),
        bytes_accessed=int(24 * Bp + 12_000))
    out_t = pl.pallas_call(
        nfds_forward_kernel,
        out_shape=jax.ShapeDtypeStruct((DIM, Bp), jnp.float32),
        grid=grid,
        in_specs=[batched, batched, resident(cols_p), resident(w2f_p),
                  resident(w2j_p), resident(w3_p), resident(b3_p)],
        out_specs=batched,
        compiler_params=pltpu.CompilerParams(
            dimension_semantics=("parallel",)),
        cost_estimate=cost,
    )(xT, xsT, cols_p, w2f_p, w2j_p, w3_p, b3_p)
    return out_t[:, :B].T


# ---------------- pure-JAX reference (autodiff Jacobian) ----------------
def make_reference(params):
    w1_all, b1_all, W2_all, b2_all, w3_all, b3_all = params

    def fcnn_ref(z, idx):
        h1 = jnp.tanh(z * w1_all[idx] + b1_all[idx])
        h2 = jnp.tanh(h1 @ W2_all[idx] + b2_all[idx])
        return jnp.sum(h2 * w3_all[idx], axis=-1, keepdims=True) + b3_all[idx]

    def phi_single(xi):  # xi: (2,)
        lower, upper = xi[0:1], xi[1:2]
        for f in range(N_FLOWS):
            base = 4 * f
            t1 = fcnn_ref(lower, base + 0)
            s1 = fcnn_ref(lower, base + 1)
            upper = t1 + upper * jnp.exp(s1)
            t2 = fcnn_ref(upper, base + 2)
            s2 = fcnn_ref(upper, base + 3)
            lower = t2 + lower * jnp.exp(s2)
        return jnp.concatenate([lower, upper], axis=0)

    def ref_forward(x, x_star):
        y = jax.vmap(phi_single)(x)
        y_star = jax.vmap(phi_single)(x_star)
        J = jax.vmap(jax.jacfwd(phi_single))(x)        # (B, Dy, Dx)
        pg = -2.0 * (y - y_star)
        return jnp.einsum('bij,bi->bj', J, pg)
    return ref_forward


if __name__ == "__main__":
    key = jax.random.PRNGKey(0)
    k_w1, k_w2, k_w3, k_b1, k_b2, k_b3, k_x, k_xs = jax.random.split(key, 8)

    # Xavier-uniform weights; small random biases (stricter check of bias packing).
    lim1 = float(np.sqrt(6.0 / (1 + HIDDEN)))
    lim2 = float(np.sqrt(6.0 / (HIDDEN + HIDDEN)))
    lim3 = float(np.sqrt(6.0 / (HIDDEN + 1)))
    w1_all = jax.random.uniform(k_w1, (N_NETS, HIDDEN), jnp.float32, -lim1, lim1)
    W2_all = jax.random.uniform(k_w2, (N_NETS, HIDDEN, HIDDEN), jnp.float32, -lim2, lim2)
    w3_all = jax.random.uniform(k_w3, (N_NETS, HIDDEN), jnp.float32, -lim3, lim3)
    b1_all = 0.1 * jax.random.normal(k_b1, (N_NETS, HIDDEN), jnp.float32)
    b2_all = 0.1 * jax.random.normal(k_b2, (N_NETS, HIDDEN), jnp.float32)
    b3_all = 0.1 * jax.random.normal(k_b3, (N_NETS, 1), jnp.float32)
    params = (w1_all, b1_all, W2_all, b2_all, w3_all, b3_all)

    ref_fn = make_reference(params)

    # Small batch: padded to 128, single tile.
    x8 = jax.random.normal(k_x, (8, DIM), jnp.float32)
    xs8 = jax.random.normal(k_xs, (8, DIM), jnp.float32)
    out8 = jax.block_until_ready(nfds_forward(x8, xs8, params))
    np.testing.assert_allclose(np.asarray(out8), np.asarray(ref_fn(x8, xs8)),
                               rtol=2e-3, atol=2e-3)

    # Ragged batch exercising padding + a real 2-step lane-aligned parallel grid.
    kx2, kxs2 = jax.random.split(k_x)
    x200 = jax.random.normal(kx2, (200, DIM), jnp.float32)
    xs200 = jax.random.normal(kxs2, (200, DIM), jnp.float32)
    out200 = jax.block_until_ready(nfds_forward(x200, xs200, params))
    np.testing.assert_allclose(np.asarray(out200), np.asarray(ref_fn(x200, xs200)),
                               rtol=2e-3, atol=2e-3)

    print("KERNEL_OK")
</pallas_src>

<mosaic_0001>
module attributes {stable_mosaic.version = 11 : i64} {
  func.func @nfds_forward_kernel(%arg0: i32, %arg1: memref<2x128xf32, #tpu.memory_space<vmem>>, %arg2: memref<2x128xf32, #tpu.memory_space<vmem>>, %arg3: memref<96x3xf32, #tpu.memory_space<vmem>>, %arg4: memref<96x16xf32, #tpu.memory_space<vmem>>, %arg5: memref<96x16xf32, #tpu.memory_space<vmem>>, %arg6: memref<48x16xf32, #tpu.memory_space<vmem>>, %arg7: memref<48x1xf32, #tpu.memory_space<vmem>>, %arg8: memref<2x128xf32, #tpu.memory_space<vmem>>) attributes {dimension_semantics = [#tpu.dimension_semantics<parallel>], iteration_bounds = array<i64: 1>, scalar_prefetch = 0 : i64, scratch_operands = 0 : i64, tpu.core_type = #tpu.core_type<tc>, window_params = [{transform_indices = @transform_0, window_bounds = array<i64: 2, 128>}, {transform_indices = @transform_1, window_bounds = array<i64: 2, 128>}, {pipeline_mode = #tpu.pipeline_mode<synchronous>, transform_indices = @transform_2, window_bounds = array<i64: 96, 3>}, {pipeline_mode = #tpu.pipeline_mode<synchronous>, transform_indices = @transform_3, window_bounds = array<i64: 96, 16>}, {pipeline_mode = #tpu.pipeline_mode<synchronous>, transform_indices = @transform_4, window_bounds = array<i64: 96, 16>}, {pipeline_mode = #tpu.pipeline_mode<synchronous>, transform_indices = @transform_5, window_bounds = array<i64: 48, 16>}, {pipeline_mode = #tpu.pipeline_mode<synchronous>, transform_indices = @transform_6, window_bounds = array<i64: 48, 1>}, {transform_indices = @transform_7, window_bounds = array<i64: 2, 128>}]} {
    %c0 = arith.constant 0 : index
    %c0_0 = arith.constant 0 : index
    %0 = vector.load %arg1[%c0, %c0_0] : memref<2x128xf32, #tpu.memory_space<vmem>>, vector<2x128xf32>
    %c0_1 = arith.constant 0 : index
    %c0_2 = arith.constant 0 : index
    %1 = vector.load %arg2[%c0_1, %c0_2] : memref<2x128xf32, #tpu.memory_space<vmem>>, vector<2x128xf32>
    %2 = tpu.concatenate %0, %1 in 1 : vector<2x128xf32>, vector<2x128xf32> -> vector<2x256xf32>
    %3 = vector.extract_strided_slice %2 {offsets = [0, 0], sizes = [1, 256], strides = [1, 1]} : vector<2x256xf32> to vector<1x256xf32>
    %4 = vector.extract_strided_slice %2 {offsets = [1, 0], sizes = [1, 256], strides = [1, 1]} : vector<2x256xf32> to vector<1x256xf32>
    %c0_3 = arith.constant 0 : index
    %c0_4 = arith.constant 0 : index
    %5 = vector.load %arg3[%c0_3, %c0_4] : memref<96x3xf32, #tpu.memory_space<vmem>>, vector<16x3xf32>
    %6 = vector.extract_strided_slice %5 {offsets = [0, 0], sizes = [16, 1], strides = [1, 1]} : vector<16x3xf32> to vector<16x1xf32>
    %7 = vector.extract_strided_slice %5 {offsets = [0, 1], sizes = [16, 1], strides = [1, 1]} : vector<16x3xf32> to vector<16x1xf32>
    %8 = vector.extract_strided_slice %5 {offsets = [0, 2], sizes = [16, 1], strides = [1, 1]} : vector<16x3xf32> to vector<16x1xf32>
    %c0_5 = arith.constant 0 : index
    %c0_6 = arith.constant 0 : index
    %9 = vector.load %arg4[%c0_5, %c0_6] : memref<96x16xf32, #tpu.memory_space<vmem>>, vector<16x16xf32>
    %c0_7 = arith.constant 0 : index
    %c0_8 = arith.constant 0 : index
    %10 = vector.load %arg5[%c0_7, %c0_8] : memref<96x16xf32, #tpu.memory_space<vmem>>, vector<16x16xf32>
    %c0_9 = arith.constant 0 : index
    %c0_10 = arith.constant 0 : index
    %11 = vector.load %arg6[%c0_9, %c0_10] : memref<48x16xf32, #tpu.memory_space<vmem>>, vector<8x16xf32>
    %c0_11 = arith.constant 0 : index
    %c0_12 = arith.constant 0 : index
    %12 = vector.load %arg7[%c0_11, %c0_12] : memref<48x1xf32, #tpu.memory_space<vmem>>, vector<8x1xf32>
    %13 = vector.broadcast %6 : vector<16x1xf32> to vector<16x256xf32>
    %14 = vector.broadcast %3 : vector<1x256xf32> to vector<16x256xf32>
    %15 = arith.mulf %13, %14 : vector<16x256xf32>
    %16 = vector.broadcast %7 : vector<16x1xf32> to vector<16x256xf32>
    %17 = arith.addf %15, %16 : vector<16x256xf32>
    %18 = math.tanh %17 : vector<16x256xf32>
    %cst = arith.constant dense<0.000000e+00> : vector<16x256xf32>
    %19 = tpu.matmul %9, %18, %cst {dimension_numbers = #tpu.dot_dimension_numbers<[1], [0], [0], [1], [0, 0, 1, 1], [], []>} : vector<16x16xf32>, vector<16x256xf32>, vector<16x256xf32> -> vector<16x256xf32>
    %20 = vector.broadcast %8 : vector<16x1xf32> to vector<16x256xf32>
    %21 = arith.addf %19, %20 : vector<16x256xf32>
    %22 = math.tanh %21 : vector<16x256xf32>
    %cst_13 = arith.constant dense<0.000000e+00> : vector<8x256xf32>
    %23 = tpu.matmul %11, %22, %cst_13 {dimension_numbers = #tpu.dot_dimension_numbers<[1], [0], [0], [1], [0, 0, 1, 1], [], []>} : vector<8x16xf32>, vector<16x256xf32>, vector<8x256xf32> -> vector<8x256xf32>
    %24 = vector.broadcast %12 : vector<8x1xf32> to vector<8x256xf32>
    %25 = arith.addf %23, %24 : vector<8x256xf32>
    %26 = vector.extract_strided_slice %25 {offsets = [0, 0], sizes = [1, 256], strides = [1, 1]} : vector<8x256xf32> to vector<1x256xf32>
    %27 = vector.extract_strided_slice %25 {offsets = [1, 0], sizes = [1, 256], strides = [1, 1]} : vector<8x256xf32> to vector<1x256xf32>
    %28 = math.exp %27 : vector<1x256xf32>
    %29 = vector.extract_strided_slice %18 {offsets = [0, 0], sizes = [16, 128], strides = [1, 1]} : vector<16x256xf32> to vector<16x128xf32>
    %30 = vector.extract_strided_slice %22 {offsets = [0, 0], sizes = [16, 128], strides = [1, 1]} : vector<16x256xf32> to vector<16x128xf32>
    %31 = arith.mulf %29, %29 : vector<16x128xf32>
    %cst_14 = arith.constant 1.000000e+00 : f32
    %32 = vector.broadcast %cst_14 : f32 to vector<16x128xf32>
    %33 = arith.subf %32, %31 : vector<16x128xf32>
    %cst_15 = arith.constant dense<0.000000e+00> : vector<16x128xf32>
    %34 = tpu.matmul %10, %33, %cst_15 {dimension_numbers = #tpu.dot_dimension_numbers<[1], [0], [0], [1], [0, 0, 1, 1], [], []>} : vector<16x16xf32>, vector<16x128xf32>, vector<16x128xf32> -> vector<16x128xf32>
    %35 = arith.mulf %30, %30 : vector<16x128xf32>
    %cst_16 = arith.constant 1.000000e+00 : f32
    %36 = vector.broadcast %cst_16 : f32 to vector<16x128xf32>
    %37 = arith.subf %36, %35 : vector<16x128xf32>
    %38 = arith.mulf %37, %34 : vector<16x128xf32>
    %cst_17 = arith.constant dense<0.000000e+00> : vector<8x128xf32>
    %39 = tpu.matmul %11, %38, %cst_17 {dimension_numbers = #tpu.dot_dimension_numbers<[1], [0], [0], [1], [0, 0, 1, 1], [], []>} : vector<8x16xf32>, vector<16x128xf32>, vector<8x128xf32> -> vector<8x128xf32>
    %40 = vector.extract_strided_slice %39 {offsets = [0, 0], sizes = [1, 128], strides = [1, 1]} : vector<8x128xf32> to vector<1x128xf32>
    %41 = vector.extract_strided_slice %39 {offsets = [1, 0], sizes = [1, 128], strides = [1, 1]} : vector<8x128xf32> to vector<1x128xf32>
    %42 = arith.mulf %4, %28 : vector<1x256xf32>
    %43 = vector.extract_strided_slice %42 {offsets = [0, 0], sizes = [1, 128], strides = [1, 1]} : vector<1x256xf32> to vector<1x128xf32>
    %44 = arith.mulf %43, %41 : vector<1x128xf32>
    %45 = arith.addf %40, %44 : vector<1x128xf32>
    %46 = arith.addf %26, %42 : vector<1x256xf32>
    %47 = vector.extract_strided_slice %28 {offsets = [0, 0], sizes = [1, 128], strides = [1, 1]} : vector<1x256xf32> to vector<1x128xf32>
    %c16 = arith.constant 16 : index
    %c0_18 = arith.constant 0 : index
    %48 = vector.load %arg3[%c16, %c0_18] : memref<96x3xf32, #tpu.memory_space<vmem>>, vector<16x3xf32>
    %49 = vector.extract_strided_slice %48 {offsets = [0, 0], sizes = [16, 1], strides = [1, 1]} : vector<16x3xf32> to vector<16x1xf32>
    %50 = vector.extract_strided_slice %48 {offsets = [0, 1], sizes = [16, 1], strides = [1, 1]} : vector<16x3xf32> to vector<16x1xf32>
    %51 = vector.extract_strided_slice %48 {offsets = [0, 2], sizes = [16, 1], strides = [1, 1]} : vector<16x3xf32> to vector<16x1xf32>
    %c16_19 = arith.constant 16 : index
    %c0_20 = arith.constant 0 : index
    %52 = vector.load %arg4[%c16_19, %c0_20] : memref<96x16xf32, #tpu.memory_space<vmem>>, vector<16x16xf32>
    %c16_21 = arith.constant 16 : index
    %c0_22 = arith.constant 0 : index
    %53 = vector.load %arg5[%c16_21, %c0_22] : memref<96x16xf32, #tpu.memory_space<vmem>>, vector<16x16xf32>
    %c8 = arith.constant 8 : index
    %c0_23 = arith.constant 0 : index
    %54 = vector.load %arg6[%c8, %c0_23] : memref<48x16xf32, #tpu.memory_space<vmem>>, vector<8x16xf32>
    %c8_24 = arith.constant 8 : index
    %c0_25 = arith.constant 0 : index
    %55 = vector.load %arg7[%c8_24, %c0_25] : memref<48x1xf32, #tpu.memory_space<vmem>>, vector<8x1xf32>
    %56 = vector.broadcast %49 : vector<16x1xf32> to vector<16x256xf32>
    %57 = vector.broadcast %46 : vector<1x256xf32> to vector<16x256xf32>
    %58 = arith.mulf %56, %57 : vector<16x256xf32>
    %59 = vector.broadcast %50 : vector<16x1xf32> to vector<16x256xf32>
    %60 = arith.addf %58, %59 : vector<16x256xf32>
    %61 = math.tanh %60 : vector<16x256xf32>
    %cst_26 = arith.constant dense<0.000000e+00> : vector<16x256xf32>
    %62 = tpu.matmul %52, %61, %cst_26 {dimension_numbers = #tpu.dot_dimension_numbers<[1], [0], [0], [1], [0, 0, 1, 1], [], []>} : vector<16x16xf32>, vector<16x256xf32>, vector<16x256xf32> -> vector<16x256xf32>
    %63 = vector.broadcast %51 : vector<16x1xf32> to vector<16x256xf32>
    %64 = arith.addf %62, %63 : vector<16x256xf32>
    %65 = math.tanh %64 : vector<16x256xf32>
    %cst_27 = arith.constant dense<0.000000e+00> : vector<8x256xf32>
    %66 = tpu.matmul %54, %65, %cst_27 {dimension_numbers = #tpu.dot_dimension_numbers<[1], [0], [0], [1], [0, 0, 1, 1], [], []>} : vector<8x16xf32>, vector<16x256xf32>, vector<8x256xf32> -> vector<8x256xf32>
    %67 = vector.broadcast %55 : vector<8x1xf32> to vector<8x256xf32>
    %68 = arith.addf %66, %67 : vector<8x256xf32>
    %69 = vector.extract_strided_slice %68 {offsets = [0, 0], sizes = [1, 256], strides = [1, 1]} : vector<8x256xf32> to vector<1x256xf32>
    %70 = vector.extract_strided_slice %68 {offsets = [1, 0], sizes = [1, 256], strides = [1, 1]} : vector<8x256xf32> to vector<1x256xf32>
    %71 = math.exp %70 : vector<1x256xf32>
    %72 = vector.extract_strided_slice %61 {offsets = [0, 0], sizes = [16, 128], strides = [1, 1]} : vector<16x256xf32> to vector<16x128xf32>
    %73 = vector.extract_strided_slice %65 {offsets = [0, 0], sizes = [16, 128], strides = [1, 1]} : vector<16x256xf32> to vector<16x128xf32>
    %74 = arith.mulf %72, %72 : vector<16x128xf32>
    %cst_28 = arith.constant 1.000000e+00 : f32
    %75 = vector.broadcast %cst_28 : f32 to vector<16x128xf32>
    %76 = arith.subf %75, %74 : vector<16x128xf32>
    %cst_29 = arith.constant dense<0.000000e+00> : vector<16x128xf32>
    %77 = tpu.matmul %53, %76, %cst_29 {dimension_numbers = #tpu.dot_dimension_numbers<[1], [0], [0], [1], [0, 0, 1, 1], [], []>} : vector<16x16xf32>, vector<16x128xf32>, vector<16x128xf32> -> vector<16x128xf32>
    %78 = arith.mulf %73, %73 : vector<16x128xf32>
    %cst_30 = arith.constant 1.000000e+00 : f32
    %79 = vector.broadcast %cst_30 : f32 to vector<16x128xf32>
    %80 = arith.subf %79, %78 : vector<16x128xf32>
    %81 = arith.mulf %80, %77 : vector<16x128xf32>
    %cst_31 = arith.constant dense<0.000000e+00> : vector<8x128xf32>
    %82 = tpu.matmul %54, %81, %cst_31 {dimension_numbers = #tpu.dot_dimension_numbers<[1], [0], [0], [1], [0, 0, 1, 1], [], []>} : vector<8x16xf32>, vector<16x128xf32>, vector<8x128xf32> -> vector<8x128xf32>
    %83 = vector.extract_strided_slice %82 {offsets = [0, 0], sizes = [1, 128], strides = [1, 1]} : vector<8x128xf32> to vector<1x128xf32>
    %84 = vector.extract_strided_slice %82 {offsets = [1, 0], sizes = [1, 128], strides = [1, 1]} : vector<8x128xf32> to vector<1x128xf32>
    %85 = arith.mulf %3, %71 : vector<1x256xf32>
    %86 = vector.extract_strided_slice %85 {offsets = [0, 0], sizes = [1, 128], strides = [1, 1]} : vector<1x256xf32> to vector<1x128xf32>
    %87 = arith.mulf %86, %84 : vector<1x128xf32>
    %88 = arith.addf %83, %87 : vector<1x128xf32>
    %89 = arith.addf %69, %85 : vector<1x256xf32>
    %90 = vector.extract_strided_slice %71 {offsets = [0, 0], sizes = [1, 128], strides = [1, 1]} : vector<1x256xf32> to vector<1x128xf32>
    %c32 = arith.constant 32 : index
    %c0_32 = arith.constant 0 : index
    %91 = vector.load %arg3[%c32, %c0_32] : memref<96x3xf32, #tpu.memory_space<vmem>>, vector<16x3xf32>
    %92 = vector.extract_strided_slice %91 {offsets = [0, 0], sizes = [16, 1], strides = [1, 1]} : vector<16x3xf32> to vector<16x1xf32>
    %93 = vector.extract_strided_slice %91 {offsets = [0, 1], sizes = [16, 1], strides = [1, 1]} : vector<16x3xf32> to vector<16x1xf32>
    %94 = vector.extract_strided_slice %91 {offsets = [0, 2], sizes = [16, 1], strides = [1, 1]} : vector<16x3xf32> to vector<16x1xf32>
    %c32_33 = arith.constant 32 : index
    %c0_34 = arith.constant 0 : index
    %95 = vector.load %arg4[%c32_33, %c0_34] : memref<96x16xf32, #tpu.memory_space<vmem>>, vector<16x16xf32>
    %c32_35 = arith.constant 32 : index
    %c0_36 = arith.constant 0 : index
    %96 = vector.load %arg5[%c32_35, %c0_36] : memref<96x16xf32, #tpu.memory_space<vmem>>, vector<16x16xf32>
    %c16_37 = arith.constant 16 : index
    %c0_38 = arith.constant 0 : index
    %97 = vector.load %arg6[%c16_37, %c0_38] : memref<48x16xf32, #tpu.memory_space<vmem>>, vector<8x16xf32>
    %c16_39 = arith.constant 16 : index
    %c0_40 = arith.constant 0 : index
    %98 = vector.load %arg7[%c16_39, %c0_40] : memref<48x1xf32, #tpu.memory_space<vmem>>, vector<8x1xf32>
    %99 = vector.broadcast %92 : vector<16x1xf32> to vector<16x256xf32>
    %100 = vector.broadcast %89 : vector<1x256xf32> to vector<16x256xf32>
    %101 = arith.mulf %99, %100 : vector<16x256xf32>
    %102 = vector.broadcast %93 : vector<16x1xf32> to vector<16x256xf32>
    %103 = arith.addf %101, %102 : vector<16x256xf32>
    %104 = math.tanh %103 : vector<16x256xf32>
    %cst_41 = arith.constant dense<0.000000e+00> : vector<16x256xf32>
    %105 = tpu.matmul %95, %104, %cst_41 {dimension_numbers = #tpu.dot_dimension_numbers<[1], [0], [0], [1], [0, 0, 1, 1], [], []>} : vector<16x16xf32>, vector<16x256xf32>, vector<16x256xf32> -> vector<16x256xf32>
    %106 = vector.broadcast %94 : vector<16x1xf32> to vector<16x256xf32>
    %107 = arith.addf %105, %106 : vector<16x256xf32>
    %108 = math.tanh %107 : vector<16x256xf32>
    %cst_42 = arith.constant dense<0.000000e+00> : vector<8x256xf32>
    %109 = tpu.matmul %97, %108, %cst_42 {dimension_numbers = #tpu.dot_dimension_numbers<[1], [0], [0], [1], [0, 0, 1, 1], [], []>} : vector<8x16xf32>, vector<16x256xf32>, vector<8x256xf32> -> vector<8x256xf32>
    %110 = vector.broadcast %98 : vector<8x1xf32> to vector<8x256xf32>
    %111 = arith.addf %109, %110 : vector<8x256xf32>
    %112 = vector.extract_strided_slice %111 {offsets = [0, 0], sizes = [1, 256], strides = [1, 1]} : vector<8x256xf32> to vector<1x256xf32>
    %113 = vector.extract_strided_slice %111 {offsets = [1, 0], sizes = [1, 256], strides = [1, 1]} : vector<8x256xf32> to vector<1x256xf32>
    %114 = math.exp %113 : vector<1x256xf32>
    %115 = vector.extract_strided_slice %104 {offsets = [0, 0], sizes = [16, 128], strides = [1, 1]} : vector<16x256xf32> to vector<16x128xf32>
    %116 = vector.extract_strided_slice %108 {offsets = [0, 0], sizes = [16, 128], strides = [1, 1]} : vector<16x256xf32> to vector<16x128xf32>
    %117 = arith.mulf %115, %115 : vector<16x128xf32>
    %cst_43 = arith.constant 1.000000e+00 : f32
    %118 = vector.broadcast %cst_43 : f32 to vector<16x128xf32>
    %119 = arith.subf %118, %117 : vector<16x128xf32>
    %cst_44 = arith.constant dense<0.000000e+00> : vector<16x128xf32>
    %120 = tpu.matmul %96, %119, %cst_44 {dimension_numbers = #tpu.dot_dimension_numbers<[1], [0], [0], [1], [0, 0, 1, 1], [], []>} : vector<16x16xf32>, vector<16x128xf32>, vector<16x128xf32> -> vector<16x128xf32>
    %121 = arith.mulf %116, %116 : vector<16x128xf32>
    %cst_45 = arith.constant 1.000000e+00 : f32
    %122 = vector.broadcast %cst_45 : f32 to vector<16x128xf32>
    %123 = arith.subf %122, %121 : vector<16x128xf32>
    %124 = arith.mulf %123, %120 : vector<16x128xf32>
    %cst_46 = arith.constant dense<0.000000e+00> : vector<8x128xf32>
    %125 = tpu.matmul %97, %124, %cst_46 {dimension_numbers = #tpu.dot_dimension_numbers<[1], [0], [0], [1], [0, 0, 1, 1], [], []>} : vector<8x16xf32>, vector<16x128xf32>, vector<8x128xf32> -> vector<8x128xf32>
    %126 = vector.extract_strided_slice %125 {offsets = [0, 0], sizes = [1, 128], strides = [1, 1]} : vector<8x128xf32> to vector<1x128xf32>
    %127 = vector.extract_strided_slice %125 {offsets = [1, 0], sizes = [1, 128], strides = [1, 1]} : vector<8x128xf32> to vector<1x128xf32>
    %128 = arith.mulf %46, %114 : vector<1x256xf32>
    %129 = vector.extract_strided_slice %128 {offsets = [0, 0], sizes = [1, 128], strides = [1, 1]} : vector<1x256xf32> to vector<1x128xf32>
    %130 = arith.mulf %129, %127 : vector<1x128xf32>
    %131 = arith.addf %126, %130 : vector<1x128xf32>
    %132 = arith.addf %112, %128 : vector<1x256xf32>
    %133 = vector.extract_strided_slice %114 {offsets = [0, 0], sizes = [1, 128], strides = [1, 1]} : vector<1x256xf32> to vector<1x128xf32>
    %c48 = arith.constant 48 : index
    %c0_47 = arith.constant 0 : index
    %134 = vector.load %arg3[%c48, %c0_47] : memref<96x3xf32, #tpu.memory_space<vmem>>, vector<16x3xf32>
    %135 = vector.extract_strided_slice %134 {offsets = [0, 0], sizes = [16, 1], strides = [1, 1]} : vector<16x3xf32> to vector<16x1xf32>
    %136 = vector.extract_strided_slice %134 {offsets = [0, 1], sizes = [16, 1], strides = [1, 1]} : vector<16x3xf32> to vector<16x1xf32>
    %137 = vector.extract_strided_slice %134 {offsets = [0, 2], sizes = [16, 1], strides = [1, 1]} : vector<16x3xf32> to vector<16x1xf32>
    %c48_48 = arith.constant 48 : index
    %c0_49 = arith.constant 0 : index
    %138 = vector.load %arg4[%c48_48, %c0_49] : memref<96x16xf32, #tpu.memory_space<vmem>>, vector<16x16xf32>
    %c48_50 = arith.constant 48 : index
    %c0_51 = arith.constant 0 : index
    %139 = vector.load %arg5[%c48_50, %c0_51] : memref<96x16xf32, #tpu.memory_space<vmem>>, vector<16x16xf32>
    %c24 = arith.constant 24 : index
    %c0_52 = arith.constant 0 : index
    %140 = vector.load %arg6[%c24, %c0_52] : memref<48x16xf32, #tpu.memory_space<vmem>>, vector<8x16xf32>
    %c24_53 = arith.constant 24 : index
    %c0_54 = arith.constant 0 : index
    %141 = vector.load %arg7[%c24_53, %c0_54] : memref<48x1xf32, #tpu.memory_space<vmem>>, vector<8x1xf32>
    %142 = vector.broadcast %135 : vector<16x1xf32> to vector<16x256xf32>
    %143 = vector.broadcast %132 : vector<1x256xf32> to vector<16x256xf32>
    %144 = arith.mulf %142, %143 : vector<16x256xf32>
    %145 = vector.broadcast %136 : vector<16x1xf32> to vector<16x256xf32>
    %146 = arith.addf %144, %145 : vector<16x256xf32>
    %147 = math.tanh %146 : vector<16x256xf32>
    %cst_55 = arith.constant dense<0.000000e+00> : vector<16x256xf32>
    %148 = tpu.matmul %138, %147, %cst_55 {dimension_numbers = #tpu.dot_dimension_numbers<[1], [0], [0], [1], [0, 0, 1, 1], [], []>} : vector<16x16xf32>, vector<16x256xf32>, vector<16x256xf32> -> vector<16x256xf32>
    %149 = vector.broadcast %137 : vector<16x1xf32> to vector<16x256xf32>
    %150 = arith.addf %148, %149 : vector<16x256xf32>
    %151 = math.tanh %150 : vector<16x256xf32>
    %cst_56 = arith.constant dense<0.000000e+00> : vector<8x256xf32>
    %152 = tpu.matmul %140, %151, %cst_56 {dimension_numbers = #tpu.dot_dimension_numbers<[1], [0], [0], [1], [0, 0, 1, 1], [], []>} : vector<8x16xf32>, vector<16x256xf32>, vector<8x256xf32> -> vector<8x256xf32>
    %153 = vector.broadcast %141 : vector<8x1xf32> to vector<8x256xf32>
    %154 = arith.addf %152, %153 : vector<8x256xf32>
    %155 = vector.extract_strided_slice %154 {offsets = [0, 0], sizes = [1, 256], strides = [1, 1]} : vector<8x256xf32> to vector<1x256xf32>
    %156 = vector.extract_strided_slice %154 {offsets = [1, 0], sizes = [1, 256], strides = [1, 1]} : vector<8x256xf32> to vector<1x256xf32>
    %157 = math.exp %156 : vector<1x256xf32>
    %158 = vector.extract_strided_slice %147 {offsets = [0, 0], sizes = [16, 128], strides = [1, 1]} : vector<16x256xf32> to vector<16x128xf32>
    %159 = vector.extract_strided_slice %151 {offsets = [0, 0], sizes = [16, 128], strides = [1, 1]} : vector<16x256xf32> to vector<16x128xf32>
    %160 = arith.mulf %158, %158 : vector<16x128xf32>
    %cst_57 = arith.constant 1.000000e+00 : f32
    %161 = vector.broadcast %cst_57 : f32 to vector<16x128xf32>
    %162 = arith.subf %161, %160 : vector<16x128xf32>
    %cst_58 = arith.constant dense<0.000000e+00> : vector<16x128xf32>
    %163 = tpu.matmul %139, %162, %cst_58 {dimension_numbers = #tpu.dot_dimension_numbers<[1], [0], [0], [1], [0, 0, 1, 1], [], []>} : vector<16x16xf32>, vector<16x128xf32>, vector<16x128xf32> -> vector<16x128xf32>
    %164 = arith.mulf %159, %159 : vector<16x128xf32>
    %cst_59 = arith.constant 1.000000e+00 : f32
    %165 = vector.broadcast %cst_59 : f32 to vector<16x128xf32>
    %166 = arith.subf %165, %164 : vector<16x128xf32>
    %167 = arith.mulf %166, %163 : vector<16x128xf32>
    %cst_60 = arith.constant dense<0.000000e+00> : vector<8x128xf32>
    %168 = tpu.matmul %140, %167, %cst_60 {dimension_numbers = #tpu.dot_dimension_numbers<[1], [0], [0], [1], [0, 0, 1, 1], [], []>} : vector<8x16xf32>, vector<16x128xf32>, vector<8x128xf32> -> vector<8x128xf32>
    %169 = vector.extract_strided_slice %168 {offsets = [0, 0], sizes = [1, 128], strides = [1, 1]} : vector<8x128xf32> to vector<1x128xf32>
    %170 = vector.extract_strided_slice %168 {offsets = [1, 0], sizes = [1, 128], strides = [1, 1]} : vector<8x128xf32> to vector<1x128xf32>
    %171 = arith.mulf %89, %157 : vector<1x256xf32>
    %172 = vector.extract_strided_slice %171 {offsets = [0, 0], sizes = [1, 128], strides = [1, 1]} : vector<1x256xf32> to vector<1x128xf32>
    %173 = arith.mulf %172, %170 : vector<1x128xf32>
    %174 = arith.addf %169, %173 : vector<1x128xf32>
    %175 = arith.addf %155, %171 : vector<1x256xf32>
    %176 = vector.extract_strided_slice %157 {offsets = [0, 0], sizes = [1, 128], strides = [1, 1]} : vector<1x256xf32> to vector<1x128xf32>
    %c64 = arith.constant 64 : index
    %c0_61 = arith.constant 0 : index
    %177 = vector.load %arg3[%c64, %c0_61] : memref<96x3xf32, #tpu.memory_space<vmem>>, vector<16x3xf32>
    %178 = vector.extract_strided_slice %177 {offsets = [0, 0], sizes = [16, 1], strides = [1, 1]} : vector<16x3xf32> to vector<16x1xf32>
    %179 = vector.extract_strided_slice %177 {offsets = [0, 1], sizes = [16, 1], strides = [1, 1]} : vector<16x3xf32> to vector<16x1xf32>
    %180 = vector.extract_strided_slice %177 {offsets = [0, 2], sizes = [16, 1], strides = [1, 1]} : vector<16x3xf32> to vector<16x1xf32>
    %c64_62 = arith.constant 64 : index
    %c0_63 = arith.constant 0 : index
    %181 = vector.load %arg4[%c64_62, %c0_63] : memref<96x16xf32, #tpu.memory_space<vmem>>, vector<16x16xf32>
    %c64_64 = arith.constant 64 : index
    %c0_65 = arith.constant 0 : index
    %182 = vector.load %arg5[%c64_64, %c0_65] : memref<96x16xf32, #tpu.memory_space<vmem>>, vector<16x16xf32>
    %c32_66 = arith.constant 32 : index
    %c0_67 = arith.constant 0 : index
    %183 = vector.load %arg6[%c32_66, %c0_67] : memref<48x16xf32, #tpu.memory_space<vmem>>, vector<8x16xf32>
    %c32_68 = arith.constant 32 : index
    %c0_69 = arith.constant 0 : index
    %184 = vector.load %arg7[%c32_68, %c0_69] : memref<48x1xf32, #tpu.memory_space<vmem>>, vector<8x1xf32>
    %185 = vector.broadcast %178 : vector<16x1xf32> to vector<16x256xf32>
    %186 = vector.broadcast %175 : vector<1x256xf32> to vector<16x256xf32>
    %187 = arith.mulf %185, %186 : vector<16x256xf32>
    %188 = vector.broadcast %179 : vector<16x1xf32> to vector<16x256xf32>
    %189 = arith.addf %187, %188 : vector<16x256xf32>
    %190 = math.tanh %189 : vector<16x256xf32>
    %cst_70 = arith.constant dense<0.000000e+00> : vector<16x256xf32>
    %191 = tpu.matmul %181, %190, %cst_70 {dimension_numbers = #tpu.dot_dimension_numbers<[1], [0], [0], [1], [0, 0, 1, 1], [], []>} : vector<16x16xf32>, vector<16x256xf32>, vector<16x256xf32> -> vector<16x256xf32>
    %192 = vector.broadcast %180 : vector<16x1xf32> to vector<16x256xf32>
    %193 = arith.addf %191, %192 : vector<16x256xf32>
    %194 = math.tanh %193 : vector<16x256xf32>
    %cst_71 = arith.constant dense<0.000000e+00> : vector<8x256xf32>
    %195 = tpu.matmul %183, %194, %cst_71 {dimension_numbers = #tpu.dot_dimension_numbers<[1], [0], [0], [1], [0, 0, 1, 1], [], []>} : vector<8x16xf32>, vector<16x256xf32>, vector<8x256xf32> -> vector<8x256xf32>
    %196 = vector.broadcast %184 : vector<8x1xf32> to vector<8x256xf32>
    %197 = arith.addf %195, %196 : vector<8x256xf32>
    %198 = vector.extract_strided_slice %197 {offsets = [0, 0], sizes = [1, 256], strides = [1, 1]} : vector<8x256xf32> to vector<1x256xf32>
    %199 = vector.extract_strided_slice %197 {offsets = [1, 0], sizes = [1, 256], strides = [1, 1]} : vector<8x256xf32> to vector<1x256xf32>
    %200 = math.exp %199 : vector<1x256xf32>
    %201 = vector.extract_strided_slice %190 {offsets = [0, 0], sizes = [16, 128], strides = [1, 1]} : vector<16x256xf32> to vector<16x128xf32>
    %202 = vector.extract_strided_slice %194 {offsets = [0, 0], sizes = [16, 128], strides = [1, 1]} : vector<16x256xf32> to vector<16x128xf32>
    %203 = arith.mulf %201, %201 : vector<16x128xf32>
    %cst_72 = arith.constant 1.000000e+00 : f32
    %204 = vector.broadcast %cst_72 : f32 to vector<16x128xf32>
    %205 = arith.subf %204, %203 : vector<16x128xf32>
    %cst_73 = arith.constant dense<0.000000e+00> : vector<16x128xf32>
    %206 = tpu.matmul %182, %205, %cst_73 {dimension_numbers = #tpu.dot_dimension_numbers<[1], [0], [0], [1], [0, 0, 1, 1], [], []>} : vector<16x16xf32>, vector<16x128xf32>, vector<16x128xf32> -> vector<16x128xf32>
    %207 = arith.mulf %202, %202 : vector<16x128xf32>
    %cst_74 = arith.constant 1.000000e+00 : f32
    %208 = vector.broadcast %cst_74 : f32 to vector<16x128xf32>
    %209 = arith.subf %208, %207 : vector<16x128xf32>
    %210 = arith.mulf %209, %206 : vector<16x128xf32>
    %cst_75 = arith.constant dense<0.000000e+00> : vector<8x128xf32>
    %211 = tpu.matmul %183, %210, %cst_75 {dimension_numbers = #tpu.dot_dimension_numbers<[1], [0], [0], [1], [0, 0, 1, 1], [], []>} : vector<8x16xf32>, vector<16x128xf32>, vector<8x128xf32> -> vector<8x128xf32>
    %212 = vector.extract_strided_slice %211 {offsets = [0, 0], sizes = [1, 128], strides = [1, 1]} : vector<8x128xf32> to vector<1x128xf32>
    %213 = vector.extract_strided_slice %211 {offsets = [1, 0], sizes = [1, 128], strides = [1, 1]} : vector<8x128xf32> to vector<1x128xf32>
    %214 = arith.mulf %132, %200 : vector<1x256xf32>
    %215 = vector.extract_strided_slice %214 {offsets = [0, 0], sizes = [1, 128], strides = [1, 1]} : vector<1x256xf32> to vector<1x128xf32>
    %216 = arith.mulf %215, %213 : vector<1x128xf32>
    %217 = arith.addf %212, %216 : vector<1x128xf32>
    %218 = arith.addf %198, %214 : vector<1x256xf32>
    %219 = vector.extract_strided_slice %200 {offsets = [0, 0], sizes = [1, 128], strides = [1, 1]} : vector<1x256xf32> to vector<1x128xf32>
    %c80 = arith.constant 80 : index
    %c0_76 = arith.constant 0 : index
    %220 = vector.load %arg3[%c80, %c0_76] : memref<96x3xf32, #tpu.memory_space<vmem>>, vector<16x3xf32>
    %221 = vector.extract_strided_slice %220 {offsets = [0, 0], sizes = [16, 1], strides = [1, 1]} : vector<16x3xf32> to vector<16x1xf32>
    %222 = vector.extract_strided_slice %220 {offsets = [0, 1], sizes = [16, 1], strides = [1, 1]} : vector<16x3xf32> to vector<16x1xf32>
    %223 = vector.extract_strided_slice %220 {offsets = [0, 2], sizes = [16, 1], strides = [1, 1]} : vector<16x3xf32> to vector<16x1xf32>
    %c80_77 = arith.constant 80 : index
    %c0_78 = arith.constant 0 : index
    %224 = vector.load %arg4[%c80_77, %c0_78] : memref<96x16xf32, #tpu.memory_space<vmem>>, vector<16x16xf32>
    %c80_79 = arith.constant 80 : index
    %c0_80 = arith.constant 0 : index
    %225 = vector.load %arg5[%c80_79, %c0_80] : memref<96x16xf32, #tpu.memory_space<vmem>>, vector<16x16xf32>
    %c40 = arith.constant 40 : index
    %c0_81 = arith.constant 0 : index
    %226 = vector.load %arg6[%c40, %c0_81] : memref<48x16xf32, #tpu.memory_space<vmem>>, vector<8x16xf32>
    %c40_82 = arith.constant 40 : index
    %c0_83 = arith.constant 0 : index
    %227 = vector.load %arg7[%c40_82, %c0_83] : memref<48x1xf32, #tpu.memory_space<vmem>>, vector<8x1xf32>
    %228 = vector.broadcast %221 : vector<16x1xf32> to vector<16x256xf32>
    %229 = vector.broadcast %218 : vector<1x256xf32> to vector<16x256xf32>
    %230 = arith.mulf %228, %229 : vector<16x256xf32>
    %231 = vector.broadcast %222 : vector<16x1xf32> to vector<16x256xf32>
    %232 = arith.addf %230, %231 : vector<16x256xf32>
    %233 = math.tanh %232 : vector<16x256xf32>
    %cst_84 = arith.constant dense<0.000000e+00> : vector<16x256xf32>
    %234 = tpu.matmul %224, %233, %cst_84 {dimension_numbers = #tpu.dot_dimension_numbers<[1], [0], [0], [1], [0, 0, 1, 1], [], []>} : vector<16x16xf32>, vector<16x256xf32>, vector<16x256xf32> -> vector<16x256xf32>
    %235 = vector.broadcast %223 : vector<16x1xf32> to vector<16x256xf32>
    %236 = arith.addf %234, %235 : vector<16x256xf32>
    %237 = math.tanh %236 : vector<16x256xf32>
    %cst_85 = arith.constant dense<0.000000e+00> : vector<8x256xf32>
    %238 = tpu.matmul %226, %237, %cst_85 {dimension_numbers = #tpu.dot_dimension_numbers<[1], [0], [0], [1], [0, 0, 1, 1], [], []>} : vector<8x16xf32>, vector<16x256xf32>, vector<8x256xf32> -> vector<8x256xf32>
    %239 = vector.broadcast %227 : vector<8x1xf32> to vector<8x256xf32>
    %240 = arith.addf %238, %239 : vector<8x256xf32>
    %241 = vector.extract_strided_slice %240 {offsets = [0, 0], sizes = [1, 256], strides = [1, 1]} : vector<8x256xf32> to vector<1x256xf32>
    %242 = vector.extract_strided_slice %240 {offsets = [1, 0], sizes = [1, 256], strides = [1, 1]} : vector<8x256xf32> to vector<1x256xf32>
    %243 = math.exp %242 : vector<1x256xf32>
    %244 = vector.extract_strided_slice %233 {offsets = [0, 0], sizes = [16, 128], strides = [1, 1]} : vector<16x256xf32> to vector<16x128xf32>
    %245 = vector.extract_strided_slice %237 {offsets = [0, 0], sizes = [16, 128], strides = [1, 1]} : vector<16x256xf32> to vector<16x128xf32>
    %246 = arith.mulf %244, %244 : vector<16x128xf32>
    %cst_86 = arith.constant 1.000000e+00 : f32
    %247 = vector.broadcast %cst_86 : f32 to vector<16x128xf32>
    %248 = arith.subf %247, %246 : vector<16x128xf32>
    %cst_87 = arith.constant dense<0.000000e+00> : vector<16x128xf32>
    %249 = tpu.matmul %225, %248, %cst_87 {dimension_numbers = #tpu.dot_dimension_numbers<[1], [0], [0], [1], [0, 0, 1, 1], [], []>} : vector<16x16xf32>, vector<16x128xf32>, vector<16x128xf32> -> vector<16x128xf32>
    %250 = arith.mulf %245, %245 : vector<16x128xf32>
    %cst_88 = arith.constant 1.000000e+00 : f32
    %251 = vector.broadcast %cst_88 : f32 to vector<16x128xf32>
    %252 = arith.subf %251, %250 : vector<16x128xf32>
    %253 = arith.mulf %252, %249 : vector<16x128xf32>
    %cst_89 = arith.constant dense<0.000000e+00> : vector<8x128xf32>
    %254 = tpu.matmul %226, %253, %cst_89 {dimension_numbers = #tpu.dot_dimension_numbers<[1], [0], [0], [1], [0, 0, 1, 1], [], []>} : vector<8x16xf32>, vector<16x128xf32>, vector<8x128xf32> -> vector<8x128xf32>
    %255 = vector.extract_strided_slice %254 {offsets = [0, 0], sizes = [1, 128], strides = [1, 1]} : vector<8x128xf32> to vector<1x128xf32>
    %256 = vector.extract_strided_slice %254 {offsets = [1, 0], sizes = [1, 128], strides = [1, 1]} : vector<8x128xf32> to vector<1x128xf32>
    %257 = arith.mulf %175, %243 : vector<1x256xf32>
    %258 = vector.extract_strided_slice %257 {offsets = [0, 0], sizes = [1, 128], strides = [1, 1]} : vector<1x256xf32> to vector<1x128xf32>
    %259 = arith.mulf %258, %256 : vector<1x128xf32>
    %260 = arith.addf %255, %259 : vector<1x128xf32>
    %261 = arith.addf %241, %257 : vector<1x256xf32>
    %262 = vector.extract_strided_slice %243 {offsets = [0, 0], sizes = [1, 128], strides = [1, 1]} : vector<1x256xf32> to vector<1x128xf32>
    %263 = vector.extract_strided_slice %261 {offsets = [0, 0], sizes = [1, 128], strides = [1, 1]} : vector<1x256xf32> to vector<1x128xf32>
    %264 = vector.extract_strided_slice %261 {offsets = [0, 128], sizes = [1, 128], strides = [1, 1]} : vector<1x256xf32> to vector<1x128xf32>
    %265 = arith.subf %263, %264 : vector<1x128xf32>
    %cst_90 = arith.constant -2.000000e+00 : f32
    %266 = vector.broadcast %cst_90 : f32 to vector<1x128xf32>
    %267 = arith.mulf %266, %265 : vector<1x128xf32>
    %268 = vector.extract_strided_slice %218 {offsets = [0, 0], sizes = [1, 128], strides = [1, 1]} : vector<1x256xf32> to vector<1x128xf32>
    %269 = vector.extract_strided_slice %218 {offsets = [0, 128], sizes = [1, 128], strides = [1, 1]} : vector<1x256xf32> to vector<1x128xf32>
    %270 = arith.subf %268, %269 : vector<1x128xf32>
    %cst_91 = arith.constant -2.000000e+00 : f32
    %271 = vector.broadcast %cst_91 : f32 to vector<1x128xf32>
    %272 = arith.mulf %271, %270 : vector<1x128xf32>
    %273 = arith.mulf %262, %267 : vector<1x128xf32>
    %274 = arith.mulf %260, %267 : vector<1x128xf32>
    %275 = arith.addf %274, %272 : vector<1x128xf32>
    %276 = arith.mulf %217, %275 : vector<1x128xf32>
    %277 = arith.addf %273, %276 : vector<1x128xf32>
    %278 = arith.mulf %219, %275 : vector<1x128xf32>
    %279 = arith.mulf %176, %277 : vector<1x128xf32>
    %280 = arith.mulf %174, %277 : vector<1x128xf32>
    %281 = arith.addf %280, %278 : vector<1x128xf32>
    %282 = arith.mulf %131, %281 : vector<1x128xf32>
    %283 = arith.addf %279, %282 : vector<1x128xf32>
    %284 = arith.mulf %133, %281 : vector<1x128xf32>
    %285 = arith.mulf %90, %283 : vector<1x128xf32>
    %286 = arith.mulf %88, %283 : vector<1x128xf32>
    %287 = arith.addf %286, %284 : vector<1x128xf32>
    %288 = arith.mulf %45, %287 : vector<1x128xf32>
    %289 = arith.addf %285, %288 : vector<1x128xf32>
    %290 = arith.mulf %47, %287 : vector<1x128xf32>
    %291 = tpu.concatenate %289, %290 in 0 : vector<1x128xf32>, vector<1x128xf32> -> vector<2x128xf32>
    %c0_92 = arith.constant 0 : index
    %c0_93 = arith.constant 0 : index
    %292 = vector.load %arg8[%c0_92, %c0_93] : memref<2x128xf32, #tpu.memory_space<vmem>>, vector<2x128xf32>
    tpu.vector_store %arg8[%c0_92, %c0_93], %291 {strides = array<i32>} : memref<2x128xf32, #tpu.memory_space<vmem>>, vector<2x128xf32>,
    return
  }
  func.func @transform_0(%arg0: i32) -> (i32, i32) {
    %c0_i32 = arith.constant 0 : i32
    %c0_i32_0 = arith.constant 0 : i32
    return %c0_i32, %arg0 : i32, i32
  }
  func.func @transform_1(%arg0: i32) -> (i32, i32) {
    %c0_i32 = arith.constant 0 : i32
    %c0_i32_0 = arith.constant 0 : i32
    return %c0_i32, %arg0 : i32, i32
  }
  func.func @transform_2(%arg0: i32) -> (i32, i32) {
    %c0_i32 = arith.constant 0 : i32
    %c0_i32_0 = arith.constant 0 : i32
    %c0_i32_1 = arith.constant 0 : i32
    return %c0_i32, %c0_i32_0 : i32, i32
  }
  func.func @transform_3(%arg0: i32) -> (i32, i32) {
    %c0_i32 = arith.constant 0 : i32
    %c0_i32_0 = arith.constant 0 : i32
    %c0_i32_1 = arith.constant 0 : i32
    return %c0_i32, %c0_i32_0 : i32, i32
  }
  func.func @transform_4(%arg0: i32) -> (i32, i32) {
    %c0_i32 = arith.constant 0 : i32
    %c0_i32_0 = arith.constant 0 : i32
    %c0_i32_1 = arith.constant 0 : i32
    return %c0_i32, %c0_i32_0 : i32, i32
  }
  func.func @transform_5(%arg0: i32) -> (i32, i32) {
    %c0_i32 = arith.constant 0 : i32
    %c0_i32_0 = arith.constant 0 : i32
    %c0_i32_1 = arith.constant 0 : i32
    return %c0_i32, %c0_i32_0 : i32, i32
  }
  func.func @transform_6(%arg0: i32) -> (i32, i32) {
    %c0_i32 = arith.constant 0 : i32
    %c0_i32_0 = arith.constant 0 : i32
    %c0_i32_1 = arith.constant 0 : i32
    return %c0_i32, %c0_i32_0 : i32, i32
  }
  func.func @transform_7(%arg0: i32) -> (i32, i32) {
    %c0_i32 = arith.constant 0 : i32
    %c0_i32_0 = arith.constant 0 : i32
    return %c0_i32, %arg0 : i32, i32
  }
}

</mosaic_0001>

<llo_original>
// kernel: tpu_custom_call.1
$region0: #{tpu_custom_call.1}
  #allocation0 [shape = 'u32[]', space=smem, size = 0x4, offset = 0x4, fixed_abs, tag = 'smem constant byte address 0x4 - core index']
  #allocation1 [shape = 'u32[72,128]{1,0:T(1,128)}', space=vmem, size = 0x9000, scoped, tag = 'internal scratch']
  %s0 = inlined_call_operand.vmem [shape: f32[2,128], index: 0, kind: input, shape index: {}]
  %s1 = inlined_call_operand.vmem [shape: f32[2,128], index: 1, kind: input, shape index: {}]
  %s2 = inlined_call_operand.vmem [shape: f32[96,3], index: 2, kind: input, shape index: {}]
  %s3 = inlined_call_operand.vmem [shape: f32[96,16], index: 3, kind: input, shape index: {}]
  %s4 = inlined_call_operand.vmem [shape: f32[96,16], index: 4, kind: input, shape index: {}]
  %s5 = inlined_call_operand.vmem [shape: f32[48,16], index: 5, kind: input, shape index: {}]
  %s6 = inlined_call_operand.vmem [shape: f32[48,1], index: 6, kind: input, shape index: {}]
  %s7 = inlined_call_operand.hbm [shape: f32[2,128], index: 7, kind: output, shape index: {}]
  %s8 = sld [smem:[#allocation0]]
  $region38: #{tpu_custom_call.1} parent=0
    _
  %s10 = ssub.s32 1, %s8
  %s11 = scalar_select 0, %s10, %s8
  $region1: #{tpu_custom_call.1} parent=0
    #allocation2 [shape = 'u8[1024]{0}', space=vmem, size = 0x400, scoped, tag = 'output window, operand 0, single buffered']
    #allocation3 [shape = 's32[1]{0}', space=sflag, size = 0x4, scoped, tag = 'scoped memory for tpu_custom_call.1']
    %12 = vsyncpa [#allocation3], 0
    // Predicated region
    $region2: #{tpu_custom_call.1} parent=1 // pred_check
      _
    $region3: #{tpu_custom_call.1} parent=1 // pred_check_branch
      %14 = sbr.rel (0) target = $region5
    $region4: #{tpu_custom_call.1} parent=1 // pred_region
      _
    $region5: #{tpu_custom_call.1} parent=1 // pred_fallthru
      _
    // Predicated region
    $region6: #{tpu_custom_call.1} parent=1 // pred_check
      _
    $region7: #{tpu_custom_call.1} parent=1 // pred_check_branch
      %16 = sbr.rel (0) target = $region9
    $region8: #{tpu_custom_call.1} parent=1 // pred_region
      _
    $region9: #{tpu_custom_call.1} parent=1 // pred_fallthru
      _
    // Predicated region
    $region10: #{tpu_custom_call.1} parent=1 // pred_check
      _
    $region11: #{tpu_custom_call.1} parent=1 // pred_check_branch
      %18 = sbr.rel (0) target = $region13
    $region12: #{tpu_custom_call.1} parent=1 // pred_region
      _
    $region13: #{tpu_custom_call.1} parent=1 // pred_fallthru
      _
    // Predicated region
    $region14: #{tpu_custom_call.1} parent=1 // pred_check
      _
    $region15: #{tpu_custom_call.1} parent=1 // pred_check_branch
      %20 = sbr.rel (0) target = $region17
    $region16: #{tpu_custom_call.1} parent=1 // pred_region
      _
    $region17: #{tpu_custom_call.1} parent=1 // pred_fallthru
      _
    // Predicated region
    $region18: #{tpu_custom_call.1} parent=1 // pred_check
      _
    $region19: #{tpu_custom_call.1} parent=1 // pred_check_branch
      %22 = sbr.rel (0) target = $region21
    $region20: #{tpu_custom_call.1} parent=1 // pred_region
      _
    $region21: #{tpu_custom_call.1} parent=1 // pred_fallthru
      _
    // Predicated region
    $region22: #{tpu_custom_call.1} parent=1 // pred_check
      _
    $region23: #{tpu_custom_call.1} parent=1 // pred_check_branch
      %24 = sbr.rel (0) target = $region25
    $region24: #{tpu_custom_call.1} parent=1 // pred_region
      _
    $region25: #{tpu_custom_call.1} parent=1 // pred_fallthru
      _
    // Predicated region
    $region26: #{tpu_custom_call.1} parent=1 // pred_check
      _
    $region27: #{tpu_custom_call.1} parent=1 // pred_check_branch
      %26 = sbr.rel (0) target = $region29
    $region28: #{tpu_custom_call.1} parent=1 // pred_region
      _
    $region29: #{tpu_custom_call.1} parent=1 // pred_fallthru
      _
    %v27 = vld [vmem:[%s0] sm:$0x3]
    %v28 = vld [vmem:[%s1] sm:$0x3]
    %v29 = vld [vmem:[%s2] sm:$0xff]
    %v30 = vld [vmem:[%s2 + $0x8] sm:$0xff]
    %v31 = vld [vmem:[%s3] sm:$0xff]
    %v32 = vld [vmem:[%s3 + $0x8] sm:$0xff]
    %v33 = vld [vmem:[%s4] sm:$0xff]
    %v34 = vld [vmem:[%s4 + $0x8] sm:$0xff]
    %v35 = vld [vmem:[%s5] sm:$0xff]
    %v36 = vld [vmem:[%s6] sm:$0xff]
    %38 = vset.pattern.permute.xlu0 0
    %39 = vperm.xlu0 %38, %v29
    %v40 = vpop.permute.xlu0 %39
    %43 = vset.pattern.permute.xlu0 0
    %44 = vperm.xlu0 %43, %v30
    %v45 = vpop.permute.xlu0 %44
    %v47 = vperm.slane %v27, 0
    %v48 = vperm.slane %v28, 0
    %v49 = vmul.f32 %v40, %v47
    %v50 = vmul.f32 %v40, %v48
    %v51 = vmul.f32 %v45, %v47
    %v52 = vmul.f32 %v45, %v48
    %53 = vset.pattern.permute.xlu0 1
    %54 = vperm.xlu0 %53, %v29
    %v55 = vpop.permute.xlu0 %54
    %57 = vset.pattern.permute.xlu0 1
    %58 = vperm.xlu0 %57, %v30
    %v59 = vpop.permute.xlu0 %58
    %v61 = vadd.f32 %v49, %v55
    %v62 = vadd.f32 %v50, %v55
    %v63 = vadd.f32 %v51, %v59
    %v64 = vadd.f32 %v52, %v59
    %v65 = vtanh.pop %v61
    %v66 = vtanh.pop %v62
    %v67 = vtanh.pop %v63
    %v68 = vtanh.pop %v64
    %69 = vset.pattern.permute.xlu0 2
    %70 = vperm.xlu0 %69, %v29
    %v71 = vpop.permute.xlu0 %70
    %73 = vset.pattern.permute.xlu0 2
    %74 = vperm.xlu0 %73, %v30
    %v75 = vpop.permute.xlu0 %74
    %vm77 = vcmask 130048
    %v79 = vsel %vm77, %v31, 0
    %v82 = vsel %vm77, %v32, 0
    %84 = vmatpush.msra.mxu0 0.0
    %85 = vmatpush.msra.mxu0 0.0
    %86 = vmatpush.msra.mxu0 0.0
    %87 = vmatpush.msra.mxu0 0.0
    %88 = vmatpush.msra.mxu0 0.0
    %89 = vmatpush.msra.mxu0 0.0
    %90 = vmatpush.msra.mxu0 0.0
    %91 = vmatpush.msra.mxu0 0.0
    %92 = vmatpush.msra.mxu0 0.0
    %93 = vmatpush.msra.mxu0 0.0
    %94 = vmatpush.msra.mxu0 0.0
    %95 = vmatpush.msra.mxu0 0.0
    %96 = vmatpush.msra.mxu0 0.0
    %97 = vmatpush.msra.mxu0 0.0
    %98 = vmatpush.msra.mxu0 %v67
    %99 = vmatpush.msra.mxu0 %v65
    %100 = vmatmul.f32.gmra.mxu0 %v79
    %v101 = vpop.f32.mrf.mxu0
    %v102 = vadd.f32 %v71, %v101
    %103 = vmatmul.f32.gmra.mxu0 %v82
    %v104 = vpop.f32.mrf.mxu0
    %v105 = vadd.f32 %v75, %v104
    %106 = vdwg.mxu0
    %107 = vmatpush.msra.mxu0 0.0
    %108 = vmatpush.msra.mxu0 0.0
    %109 = vmatpush.msra.mxu0 0.0
    %110 = vmatpush.msra.mxu0 0.0
    %111 = vmatpush.msra.mxu0 0.0
    %112 = vmatpush.msra.mxu0 0.0
    %113 = vmatpush.msra.mxu0 0.0
    %114 = vmatpush.msra.mxu0 0.0
    %115 = vmatpush.msra.mxu0 0.0
    %116 = vmatpush.msra.mxu0 0.0
    %117 = vmatpush.msra.mxu0 0.0
    %118 = vmatpush.msra.mxu0 0.0
    %119 = vmatpush.msra.mxu0 0.0
    %120 = vmatpush.msra.mxu0 0.0
    %121 = vmatpush.msra.mxu0 %v68
    %122 = vmatpush.msra.mxu0 %v66
    %123 = vmatmul.f32.gmra.mxu0 %v79
    %v124 = vpop.f32.mrf.mxu0
    %v125 = vadd.f32 %v71, %v124
    %126 = vmatmul.f32.gmra.mxu0 %v82
    %v127 = vpop.f32.mrf.mxu0
    %v128 = vadd.f32 %v75, %v127
    %129 = vdwg.mxu0
    %v130 = vtanh.pop %v102
    %v131 = vtanh.pop %v125
    %v132 = vtanh.pop %v105
    %v133 = vtanh.pop %v128
    %135 = vset.pattern.permute.xlu0 0
    %136 = vperm.xlu0 %135, %v36
    %v137 = vpop.permute.xlu0 %136
    %v140 = vsel %vm77, %v35, 0
    %142 = vmatpush.msra.mxu0 0.0
    %143 = vmatpush.msra.mxu0 0.0
    %144 = vmatpush.msra.mxu0 0.0
    %145 = vmatpush.msra.mxu0 0.0
    %146 = vmatpush.msra.mxu0 0.0
    %147 = vmatpush.msra.mxu0 0.0
    %148 = vmatpush.msra.mxu0 0.0
    %149 = vmatpush.msra.mxu0 0.0
    %150 = vmatpush.msra.mxu0 0.0
    %151 = vmatpush.msra.mxu0 0.0
    %152 = vmatpush.msra.mxu0 0.0
    %153 = vmatpush.msra.mxu0 0.0
    %154 = vmatpush.msra.mxu0 0.0
    %155 = vmatpush.msra.mxu0 0.0
    %156 = vmatpush.msra.mxu0 %v132
    %157 = vmatpush.msra.mxu0 %v130
    %158 = vmatmul.f32.gmra.mxu0 %v140
    %v159 = vpop.f32.mrf.mxu0
    %v160 = vadd.f32 %v137, %v159
    %161 = vdwg.mxu0
    %162 = vmatpush.msra.mxu0 0.0
    %163 = vmatpush.msra.mxu0 0.0
    %164 = vmatpush.msra.mxu0 0.0
    %165 = vmatpush.msra.mxu0 0.0
    %166 = vmatpush.msra.mxu0 0.0
    %167 = vmatpush.msra.mxu0 0.0
    %168 = vmatpush.msra.mxu0 0.0
    %169 = vmatpush.msra.mxu0 0.0
    %170 = vmatpush.msra.mxu0 0.0
    %171 = vmatpush.msra.mxu0 0.0
    %172 = vmatpush.msra.mxu0 0.0
    %173 = vmatpush.msra.mxu0 0.0
    %174 = vmatpush.msra.mxu0 0.0
    %175 = vmatpush.msra.mxu0 0.0
    %176 = vmatpush.msra.mxu0 %v133
    %177 = vmatpush.msra.mxu0 %v131
    %178 = vmatmul.f32.gmra.mxu0 %v140
    %v179 = vpop.f32.mrf.mxu0
    %v180 = vadd.f32 %v137, %v179
    %181 = vdwg.mxu0
    %v182 = vmul.f32 %v160, 1.442695
    %v183 = vpow.pop %v182
    %v184 = vmul.f32 %v180, 1.442695
    %v185 = vpow.pop %v184
    %v186 = vmul.f32 %v65, %v65
    %v187 = vmul.f32 %v67, %v67
    %v188 = vsub.f32 1.0, %v186
    %v189 = vsub.f32 1.0, %v187
    %v191 = vsel %vm77, %v33, 0
    %v194 = vsel %vm77, %v34, 0
    %196 = vmatpush.msra.mxu0 0.0
    %197 = vmatpush.msra.mxu0 0.0
    %198 = vmatpush.msra.mxu0 0.0
    %199 = vmatpush.msra.mxu0 0.0
    %200 = vmatpush.msra.mxu0 0.0
    %201 = vmatpush.msra.mxu0 0.0
    %202 = vmatpush.msra.mxu0 0.0
    %203 = vmatpush.msra.mxu0 0.0
    %204 = vmatpush.msra.mxu0 0.0
    %205 = vmatpush.msra.mxu0 0.0
    %206 = vmatpush.msra.mxu0 0.0
    %207 = vmatpush.msra.mxu0 0.0
    %208 = vmatpush.msra.mxu0 0.0
    %209 = vmatpush.msra.mxu0 0.0
    %210 = vmatpush.msra.mxu0 %v189
    %211 = vmatpush.msra.mxu0 %v188
    %212 = vmatmul.f32.gmra.mxu0 %v191
    %v213 = vpop.f32.mrf.mxu0
    %v214 = vadd.f32 0.0, %v213
    %215 = vmatmul.f32.gmra.mxu0 %v194
    %v216 = vpop.f32.mrf.mxu0
    %v217 = vadd.f32 0.0, %v216
    %218 = vdwg.mxu0
    %v219 = vmul.f32 %v130, %v130
    %v220 = vmul.f32 %v132, %v132
    %v221 = vsub.f32 1.0, %v219
    %v222 = vsub.f32 1.0, %v220
    %v223 = vmul.f32 %v221, %v214
    %v224 = vmul.f32 %v222, %v217
    %225 = vmatpush.msra.mxu0 0.0
    %226 = vmatpush.msra.mxu0 0.0
    %227 = vmatpush.msra.mxu0 0.0
    %228 = vmatpush.msra.mxu0 0.0
    %229 = vmatpush.msra.mxu0 0.0
    %230 = vmatpush.msra.mxu0 0.0
    %231 = vmatpush.msra.mxu0 0.0
    %232 = vmatpush.msra.mxu0 0.0
    %233 = vmatpush.msra.mxu0 0.0
    %234 = vmatpush.msra.mxu0 0.0
    %235 = vmatpush.msra.mxu0 0.0
    %236 = vmatpush.msra.mxu0 0.0
    %237 = vmatpush.msra.mxu0 0.0
    %238 = vmatpush.msra.mxu0 0.0
    %239 = vmatpush.msra.mxu0 %v224
    %240 = vmatpush.msra.mxu0 %v223
    %241 = vmatmul.f32.gmra.mxu0 %v140
    %v242 = vpop.f32.mrf.mxu0
    %v243 = vadd.f32 0.0, %v242
    %244 = vdwg.mxu0
    %v245 = vmul.f32 %v27, %v183
    %v246 = vmul.f32 %v28, %v185
    %v247 = vmul.f32 %v245, %v243
    %v249 = vrot.slane %v247, 1
    %v251 = vadd.f32 %v243, %v249
    %v254 = vrot.slane %v245, 1
    %v255 = vrot.slane %v246, 1
    %v258 = vadd.f32 %v160, %v254
    %v259 = vadd.f32 %v180, %v255
    %v260 = vld [vmem:[%s2 + $0x10] sm:$0xff]
    %v261 = vld [vmem:[%s2 + $0x18] sm:$0xff]
    %v262 = vld [vmem:[%s3 + $0x10] sm:$0xff]
    %v263 = vld [vmem:[%s3 + $0x18] sm:$0xff]
    %v264 = vld [vmem:[%s4 + $0x10] sm:$0xff]
    %v265 = vld [vmem:[%s4 + $0x18] sm:$0xff]
    %v266 = vld [vmem:[%s5 + $0x8] sm:$0xff]
    %v267 = vld [vmem:[%s6 + $0x8] sm:$0xff]
    %269 = vset.pattern.permute.xlu0 0
    %270 = vperm.xlu0 %269, %v260
    %v271 = vpop.permute.xlu0 %270
    %274 = vset.pattern.permute.xlu0 0
    %275 = vperm.xlu0 %274, %v261
    %v276 = vpop.permute.xlu0 %275
    %v278 = vperm.slane %v258, 0
    %v279 = vperm.slane %v259, 0
    %v280 = vmul.f32 %v271, %v278
    %v281 = vmul.f32 %v271, %v279
    %v282 = vmul.f32 %v276, %v278
    %v283 = vmul.f32 %v276, %v279
    %284 = vset.pattern.permute.xlu0 1
    %285 = vperm.xlu0 %284, %v260
    %v286 = vpop.permute.xlu0 %285
    %288 = vset.pattern.permute.xlu0 1
    %289 = vperm.xlu0 %288, %v261
    %v290 = vpop.permute.xlu0 %289
    %v292 = vadd.f32 %v280, %v286
    %v293 = vadd.f32 %v281, %v286
    %v294 = vadd.f32 %v282, %v290
    %v295 = vadd.f32 %v283, %v290
    %v296 = vtanh.pop %v292
    %v297 = vtanh.pop %v293
    %v298 = vtanh.pop %v294
    %v299 = vtanh.pop %v295
    %300 = vset.pattern.permute.xlu0 2
    %301 = vperm.xlu0 %300, %v260
    %v302 = vpop.permute.xlu0 %301
    %304 = vset.pattern.permute.xlu0 2
    %305 = vperm.xlu0 %304, %v261
    %v306 = vpop.permute.xlu0 %305
    %v309 = vsel %vm77, %v262, 0
    %v312 = vsel %vm77, %v263, 0
    %314 = vmatpush.msra.mxu0 0.0
    %315 = vmatpush.msra.mxu0 0.0
    %316 = vmatpush.msra.mxu0 0.0
    %317 = vmatpush.msra.mxu0 0.0
    %318 = vmatpush.msra.mxu0 0.0
    %319 = vmatpush.msra.mxu0 0.0
    %320 = vmatpush.msra.mxu0 0.0
    %321 = vmatpush.msra.mxu0 0.0
    %322 = vmatpush.msra.mxu0 0.0
    %323 = vmatpush.msra.mxu0 0.0
    %324 = vmatpush.msra.mxu0 0.0
    %325 = vmatpush.msra.mxu0 0.0
    %326 = vmatpush.msra.mxu0 0.0
    %327 = vmatpush.msra.mxu0 0.0
    %328 = vmatpush.msra.mxu0 %v298
    %329 = vmatpush.msra.mxu0 %v296
    %330 = vmatmul.f32.gmra.mxu0 %v309
    %v331 = vpop.f32.mrf.mxu0
    %v332 = vadd.f32 %v302, %v331
    %333 = vmatmul.f32.gmra.mxu0 %v312
    %v334 = vpop.f32.mrf.mxu0
    %v335 = vadd.f32 %v306, %v334
    %336 = vdwg.mxu0
    %337 = vmatpush.msra.mxu0 0.0
    %338 = vmatpush.msra.mxu0 0.0
    %339 = vmatpush.msra.mxu0 0.0
    %340 = vmatpush.msra.mxu0 0.0
    %341 = vmatpush.msra.mxu0 0.0
    %342 = vmatpush.msra.mxu0 0.0
    %343 = vmatpush.msra.mxu0 0.0
    %344 = vmatpush.msra.mxu0 0.0
    %345 = vmatpush.msra.mxu0 0.0
    %346 = vmatpush.msra.mxu0 0.0
    %347 = vmatpush.msra.mxu0 0.0
    %348 = vmatpush.msra.mxu0 0.0
    %349 = vmatpush.msra.mxu0 0.0
    %350 = vmatpush.msra.mxu0 0.0
    %351 = vmatpush.msra.mxu0 %v299
    %352 = vmatpush.msra.mxu0 %v297
    %353 = vmatmul.f32.gmra.mxu0 %v309
    %v354 = vpop.f32.mrf.mxu0
    %v355 = vadd.f32 %v302, %v354
    %356 = vmatmul.f32.gmra.mxu0 %v312
    %v357 = vpop.f32.mrf.mxu0
    %v358 = vadd.f32 %v306, %v357
    %359 = vdwg.mxu0
    %v360 = vtanh.pop %v332
    %v361 = vtanh.pop %v355
    %v362 = vtanh.pop %v335
    %v363 = vtanh.pop %v358
    %365 = vset.pattern.permute.xlu0 0
    %366 = vperm.xlu0 %365, %v267
    %v367 = vpop.permute.xlu0 %366
    %v370 = vsel %vm77, %v266, 0
    %372 = vmatpush.msra.mxu0 0.0
    %373 = vmatpush.msra.mxu0 0.0
    %374 = vmatpush.msra.mxu0 0.0
    %375 = vmatpush.msra.mxu0 0.0
    %376 = vmatpush.msra.mxu0 0.0
    %377 = vmatpush.msra.mxu0 0.0
    %378 = vmatpush.msra.mxu0 0.0
    %379 = vmatpush.msra.mxu0 0.0
    %380 = vmatpush.msra.mxu0 0.0
    %381 = vmatpush.msra.mxu0 0.0
    %382 = vmatpush.msra.mxu0 0.0
    %383 = vmatpush.msra.mxu0 0.0
    %384 = vmatpush.msra.mxu0 0.0
    %385 = vmatpush.msra.mxu0 0.0
    %386 = vmatpush.msra.mxu0 %v362
    %387 = vmatpush.msra.mxu0 %v360
    %388 = vmatmul.f32.gmra.mxu0 %v370
    %v389 = vpop.f32.mrf.mxu0
    %v390 = vadd.f32 %v367, %v389
    %391 = vdwg.mxu0
    %392 = vmatpush.msra.mxu0 0.0
    %393 = vmatpush.msra.mxu0 0.0
    %394 = vmatpush.msra.mxu0 0.0
    %395 = vmatpush.msra.mxu0 0.0
    %396 = vmatpush.msra.mxu0 0.0
    %397 = vmatpush.msra.mxu0 0.0
    %398 = vmatpush.msra.mxu0 0.0
    %399 = vmatpush.msra.mxu0 0.0
    %400 = vmatpush.msra.mxu0 0.0
    %401 = vmatpush.msra.mxu0 0.0
    %402 = vmatpush.msra.mxu0 0.0
    %403 = vmatpush.msra.mxu0 0.0
    %404 = vmatpush.msra.mxu0 0.0
    %405 = vmatpush.msra.mxu0 0.0
    %406 = vmatpush.msra.mxu0 %v363
    %407 = vmatpush.msra.mxu0 %v361
    %408 = vmatmul.f32.gmra.mxu0 %v370
    %v409 = vpop.f32.mrf.mxu0
    %v410 = vadd.f32 %v367, %v409
    %411 = vdwg.mxu0
    %v412 = vmul.f32 %v390, 1.442695
    %v413 = vpow.pop %v412
    %v414 = vmul.f32 %v410, 1.442695
    %v415 = vpow.pop %v414
    %v416 = vmul.f32 %v296, %v296
    %v417 = vmul.f32 %v298, %v298
    %v418 = vsub.f32 1.0, %v416
    %v419 = vsub.f32 1.0, %v417
    %v421 = vsel %vm77, %v264, 0
    %v424 = vsel %vm77, %v265, 0
    %426 = vmatpush.msra.mxu0 0.0
    %427 = vmatpush.msra.mxu0 0.0
    %428 = vmatpush.msra.mxu0 0.0
    %429 = vmatpush.msra.mxu0 0.0
    %430 = vmatpush.msra.mxu0 0.0
    %431 = vmatpush.msra.mxu0 0.0
    %432 = vmatpush.msra.mxu0 0.0
    %433 = vmatpush.msra.mxu0 0.0
    %434 = vmatpush.msra.mxu0 0.0
    %435 = vmatpush.msra.mxu0 0.0
    %436 = vmatpush.msra.mxu0 0.0
    %437 = vmatpush.msra.mxu0 0.0
    %438 = vmatpush.msra.mxu0 0.0
    %439 = vmatpush.msra.mxu0 0.0
    %440 = vmatpush.msra.mxu0 %v419
    %441 = vmatpush.msra.mxu0 %v418
    %442 = vmatmul.f32.gmra.mxu0 %v421
    %v443 = vpop.f32.mrf.mxu0
    %v444 = vadd.f32 0.0, %v443
    %445 = vmatmul.f32.gmra.mxu0 %v424
    %v446 = vpop.f32.mrf.mxu0
    %v447 = vadd.f32 0.0, %v446
    %448 = vdwg.mxu0
    %v449 = vmul.f32 %v360, %v360
    %v450 = vmul.f32 %v362, %v362
    %v451 = vsub.f32 1.0, %v449
    %v452 = vsub.f32 1.0, %v450
    %v453 = vmul.f32 %v451, %v444
    %v454 = vmul.f32 %v452, %v447
    %455 = vmatpush.msra.mxu0 0.0
    %456 = vmatpush.msra.mxu0 0.0
    %457 = vmatpush.msra.mxu0 0.0
    %458 = vmatpush.msra.mxu0 0.0
    %459 = vmatpush.msra.mxu0 0.0
    %460 = vmatpush.msra.mxu0 0.0
    %461 = vmatpush.msra.mxu0 0.0
    %462 = vmatpush.msra.mxu0 0.0
    %463 = vmatpush.msra.mxu0 0.0
    %464 = vmatpush.msra.mxu0 0.0
    %465 = vmatpush.msra.mxu0 0.0
    %466 = vmatpush.msra.mxu0 0.0
    %467 = vmatpush.msra.mxu0 0.0
    %468 = vmatpush.msra.mxu0 0.0
    %469 = vmatpush.msra.mxu0 %v454
    %470 = vmatpush.msra.mxu0 %v453
    %471 = vmatmul.f32.gmra.mxu0 %v370
    %v472 = vpop.f32.mrf.mxu0
    %v473 = vadd.f32 0.0, %v472
    %474 = vdwg.mxu0
    %v477 = vrot.slane %v413, 1
    %v478 = vrot.slane %v415, 1
    %v481 = vmul.f32 %v27, %v477
    %v482 = vmul.f32 %v28, %v478
    %v484 = vrot.slane %v473, 1
    %v486 = vmul.f32 %v481, %v484
    %v487 = vadd.f32 %v473, %v486
    %v488 = vadd.f32 %v390, %v481
    %v489 = vadd.f32 %v410, %v482
    %v490 = vld [vmem:[%s2 + $0x20] sm:$0xff]
    %v491 = vld [vmem:[%s2 + $0x28] sm:$0xff]
    %v492 = vld [vmem:[%s3 + $0x20] sm:$0xff]
    %v493 = vld [vmem:[%s3 + $0x28] sm:$0xff]
    %v494 = vld [vmem:[%s4 + $0x20] sm:$0xff]
    %v495 = vld [vmem:[%s4 + $0x28] sm:$0xff]
    %v496 = vld [vmem:[%s5 + $0x10] sm:$0xff]
    %v497 = vld [vmem:[%s6 + $0x10] sm:$0xff]
    %499 = vset.pattern.permute.xlu0 0
    %500 = vperm.xlu0 %499, %v490
    %v501 = vpop.permute.xlu0 %500
    %504 = vset.pattern.permute.xlu0 0
    %505 = vperm.xlu0 %504, %v491
    %v506 = vpop.permute.xlu0 %505
    %v508 = vperm.slane %v488, 0
    %v509 = vperm.slane %v489, 0
    %v510 = vmul.f32 %v501, %v508
    %v511 = vmul.f32 %v501, %v509
    %v512 = vmul.f32 %v506, %v508
    %v513 = vmul.f32 %v506, %v509
    %514 = vset.pattern.permute.xlu0 1
    %515 = vperm.xlu0 %514, %v490
    %v516 = vpop.permute.xlu0 %515
    %518 = vset.pattern.permute.xlu0 1
    %519 = vperm.xlu0 %518, %v491
    %v520 = vpop.permute.xlu0 %519
    %v522 = vadd.f32 %v510, %v516
    %v523 = vadd.f32 %v511, %v516
    %v524 = vadd.f32 %v512, %v520
    %v525 = vadd.f32 %v513, %v520
    %v526 = vtanh.pop %v522
    %v527 = vtanh.pop %v523
    %v528 = vtanh.pop %v524
    %v529 = vtanh.pop %v525
    %530 = vset.pattern.permute.xlu0 2
    %531 = vperm.xlu0 %530, %v490
    %v532 = vpop.permute.xlu0 %531
    %534 = vset.pattern.permute.xlu0 2
    %535 = vperm.xlu0 %534, %v491
    %v536 = vpop.permute.xlu0 %535
    %v539 = vsel %vm77, %v492, 0
    %v542 = vsel %vm77, %v493, 0
    %544 = vmatpush.msra.mxu0 0.0
    %545 = vmatpush.msra.mxu0 0.0
    %546 = vmatpush.msra.mxu0 0.0
    %547 = vmatpush.msra.mxu0 0.0
    %548 = vmatpush.msra.mxu0 0.0
    %549 = vmatpush.msra.mxu0 0.0
    %550 = vmatpush.msra.mxu0 0.0
    %551 = vmatpush.msra.mxu0 0.0
    %552 = vmatpush.msra.mxu0 0.0
    %553 = vmatpush.msra.mxu0 0.0
    %554 = vmatpush.msra.mxu0 0.0
    %555 = vmatpush.msra.mxu0 0.0
    %556 = vmatpush.msra.mxu0 0.0
    %557 = vmatpush.msra.mxu0 0.0
    %558 = vmatpush.msra.mxu0 %v528
    %559 = vmatpush.msra.mxu0 %v526
    %560 = vmatmul.f32.gmra.mxu0 %v539
    %v561 = vpop.f32.mrf.mxu0
    %v562 = vadd.f32 %v532, %v561
    %563 = vmatmul.f32.gmra.mxu0 %v542
    %v564 = vpop.f32.mrf.mxu0
    %v565 = vadd.f32 %v536, %v564
    %566 = vdwg.mxu0
    %567 = vmatpush.msra.mxu0 0.0
    %568 = vmatpush.msra.mxu0 0.0
    %569 = vmatpush.msra.mxu0 0.0
    %570 = vmatpush.msra.mxu0 0.0
    %571 = vmatpush.msra.mxu0 0.0
    %572 = vmatpush.msra.mxu0 0.0
    %573 = vmatpush.msra.mxu0 0.0
    %574 = vmatpush.msra.mxu0 0.0
    %575 = vmatpush.msra.mxu0 0.0
    %576 = vmatpush.msra.mxu0 0.0
    %577 = vmatpush.msra.mxu0 0.0
    %578 = vmatpush.msra.mxu0 0.0
    %579 = vmatpush.msra.mxu0 0.0
    %580 = vmatpush.msra.mxu0 0.0
    %581 = vmatpush.msra.mxu0 %v529
    %582 = vmatpush.msra.mxu0 %v527
    %583 = vmatmul.f32.gmra.mxu0 %v539
    %v584 = vpop.f32.mrf.mxu0
    %v585 = vadd.f32 %v532, %v584
    %586 = vmatmul.f32.gmra.mxu0 %v542
    %v587 = vpop.f32.mrf.mxu0
    %v588 = vadd.f32 %v536, %v587
    %589 = vdwg.mxu0
    %v590 = vtanh.pop %v562
    %v591 = vtanh.pop %v585
    %v592 = vtanh.pop %v565
    %v593 = vtanh.pop %v588
    %595 = vset.pattern.permute.xlu0 0
    %596 = vperm.xlu0 %595, %v497
    %v597 = vpop.permute.xlu0 %596
    %v600 = vsel %vm77, %v496, 0
    %602 = vmatpush.msra.mxu0 0.0
    %603 = vmatpush.msra.mxu0 0.0
    %604 = vmatpush.msra.mxu0 0.0
    %605 = vmatpush.msra.mxu0 0.0
    %606 = vmatpush.msra.mxu0 0.0
    %607 = vmatpush.msra.mxu0 0.0
    %608 = vmatpush.msra.mxu0 0.0
    %609 = vmatpush.msra.mxu0 0.0
    %610 = vmatpush.msra.mxu0 0.0
    %611 = vmatpush.msra.mxu0 0.0
    %612 = vmatpush.msra.mxu0 0.0
    %613 = vmatpush.msra.mxu0 0.0
    %614 = vmatpush.msra.mxu0 0.0
    %615 = vmatpush.msra.mxu0 0.0
    %616 = vmatpush.msra.mxu0 %v592
    %617 = vmatpush.msra.mxu0 %v590
    %618 = vmatmul.f32.gmra.mxu0 %v600
    %v619 = vpop.f32.mrf.mxu0
    %v620 = vadd.f32 %v597, %v619
    %621 = vdwg.mxu0
    %622 = vmatpush.msra.mxu0 0.0
    %623 = vmatpush.msra.mxu0 0.0
    %624 = vmatpush.msra.mxu0 0.0
    %625 = vmatpush.msra.mxu0 0.0
    %626 = vmatpush.msra.mxu0 0.0
    %627 = vmatpush.msra.mxu0 0.0
    %628 = vmatpush.msra.mxu0 0.0
    %629 = vmatpush.msra.mxu0 0.0
    %630 = vmatpush.msra.mxu0 0.0
    %631 = vmatpush.msra.mxu0 0.0
    %632 = vmatpush.msra.mxu0 0.0
    %633 = vmatpush.msra.mxu0 0.0
    %634 = vmatpush.msra.mxu0 0.0
    %635 = vmatpush.msra.mxu0 0.0
    %636 = vmatpush.msra.mxu0 %v593
    %637 = vmatpush.msra.mxu0 %v591
    %638 = vmatmul.f32.gmra.mxu0 %v600
    %v639 = vpop.f32.mrf.mxu0
    %v640 = vadd.f32 %v597, %v639
    %641 = vdwg.mxu0
    %v642 = vmul.f32 %v620, 1.442695
    %v643 = vpow.pop %v642
    %v644 = vmul.f32 %v640, 1.442695
    %v645 = vpow.pop %v644
    %v646 = vmul.f32 %v526, %v526
    %v647 = vmul.f32 %v528, %v528
    %v648 = vsub.f32 1.0, %v646
    %v649 = vsub.f32 1.0, %v647
    %v651 = vsel %vm77, %v494, 0
    %v654 = vsel %vm77, %v495, 0
    %656 = vmatpush.msra.mxu0 0.0
    %657 = vmatpush.msra.mxu0 0.0
    %658 = vmatpush.msra.mxu0 0.0
    %659 = vmatpush.msra.mxu0 0.0
    %660 = vmatpush.msra.mxu0 0.0
    %661 = vmatpush.msra.mxu0 0.0
    %662 = vmatpush.msra.mxu0 0.0
    %663 = vmatpush.msra.mxu0 0.0
    %664 = vmatpush.msra.mxu0 0.0
    %665 = vmatpush.msra.mxu0 0.0
    %666 = vmatpush.msra.mxu0 0.0
    %667 = vmatpush.msra.mxu0 0.0
    %668 = vmatpush.msra.mxu0 0.0
    %669 = vmatpush.msra.mxu0 0.0
    %670 = vmatpush.msra.mxu0 %v649
    %671 = vmatpush.msra.mxu0 %v648
    %672 = vmatmul.f32.gmra.mxu0 %v651
    %v673 = vpop.f32.mrf.mxu0
    %v674 = vadd.f32 0.0, %v673
    %675 = vmatmul.f32.gmra.mxu0 %v654
    %v676 = vpop.f32.mrf.mxu0
    %v677 = vadd.f32 0.0, %v676
    %678 = vdwg.mxu0
    %v679 = vmul.f32 %v590, %v590
    %v680 = vmul.f32 %v592, %v592
    %v681 = vsub.f32 1.0, %v679
    %v682 = vsub.f32 1.0, %v680
    %v683 = vmul.f32 %v681, %v674
    %v684 = vmul.f32 %v682, %v677
    %685 = vmatpush.msra.mxu0 0.0
    %686 = vmatpush.msra.mxu0 0.0
    %687 = vmatpush.msra.mxu0 0.0
    %688 = vmatpush.msra.mxu0 0.0
    %689 = vmatpush.msra.mxu0 0.0
    %690 = vmatpush.msra.mxu0 0.0
    %691 = vmatpush.msra.mxu0 0.0
    %692 = vmatpush.msra.mxu0 0.0
    %693 = vmatpush.msra.mxu0 0.0
    %694 = vmatpush.msra.mxu0 0.0
    %695 = vmatpush.msra.mxu0 0.0
    %696 = vmatpush.msra.mxu0 0.0
    %697 = vmatpush.msra.mxu0 0.0
    %698 = vmatpush.msra.mxu0 0.0
    %699 = vmatpush.msra.mxu0 %v684
    %700 = vmatpush.msra.mxu0 %v683
    %701 = vmatmul.f32.gmra.mxu0 %v600
    %v702 = vpop.f32.mrf.mxu0
    %v703 = vadd.f32 0.0, %v702
    %704 = vdwg.mxu0
    %v707 = vrot.slane %v643, 1
    %v708 = vrot.slane %v645, 1
    %v711 = vmul.f32 %v258, %v707
    %v712 = vmul.f32 %v259, %v708
    %v714 = vrot.slane %v703, 1
    %v716 = vmul.f32 %v711, %v714
    %v717 = vadd.f32 %v703, %v716
    %v718 = vadd.f32 %v620, %v711
    %v719 = vadd.f32 %v640, %v712
    %v720 = vld [vmem:[%s2 + $0x30] sm:$0xff]
    %v721 = vld [vmem:[%s2 + $0x38] sm:$0xff]
    %v722 = vld [vmem:[%s3 + $0x30] sm:$0xff]
    %v723 = vld [vmem:[%s3 + $0x38] sm:$0xff]
    %v724 = vld [vmem:[%s4 + $0x30] sm:$0xff]
    %v725 = vld [vmem:[%s4 + $0x38] sm:$0xff]
    %v726 = vld [vmem:[%s5 + $0x18] sm:$0xff]
    %v727 = vld [vmem:[%s6 + $0x18] sm:$0xff]
    %729 = vset.pattern.permute.xlu0 0
    %730 = vperm.xlu0 %729, %v720
    %v731 = vpop.permute.xlu0 %730
    %734 = vset.pattern.permute.xlu0 0
    %735 = vperm.xlu0 %734, %v721
    %v736 = vpop.permute.xlu0 %735
    %v738 = vperm.slane %v718, 0
    %v739 = vperm.slane %v719, 0
    %v740 = vmul.f32 %v731, %v738
    %v741 = vmul.f32 %v731, %v739
    %v742 = vmul.f32 %v736, %v738
    %v743 = vmul.f32 %v736, %v739
    %744 = vset.pattern.permute.xlu0 1
    %745 = vperm.xlu0 %744, %v720
    %v746 = vpop.permute.xlu0 %745
    %748 = vset.pattern.permute.xlu0 1
    %749 = vperm.xlu0 %748, %v721
    %v750 = vpop.permute.xlu0 %749
    %v752 = vadd.f32 %v740, %v746
    %v753 = vadd.f32 %v741, %v746
    %v754 = vadd.f32 %v742, %v750
    %v755 = vadd.f32 %v743, %v750
    %v756 = vtanh.pop %v752
    %v757 = vtanh.pop %v753
    %v758 = vtanh.pop %v754
    %v759 = vtanh.pop %v755
    %760 = vset.pattern.permute.xlu0 2
    %761 = vperm.xlu0 %760, %v720
    %v762 = vpop.permute.xlu0 %761
    %764 = vset.pattern.permute.xlu0 2
    %765 = vperm.xlu0 %764, %v721
    %v766 = vpop.permute.xlu0 %765
    %v769 = vsel %vm77, %v722, 0
    %v772 = vsel %vm77, %v723, 0
    %774 = vmatpush.msra.mxu0 0.0
    %775 = vmatpush.msra.mxu0 0.0
    %776 = vmatpush.msra.mxu0 0.0
    %777 = vmatpush.msra.mxu0 0.0
    %778 = vmatpush.msra.mxu0 0.0
    %779 = vmatpush.msra.mxu0 0.0
    %780 = vmatpush.msra.mxu0 0.0
    %781 = vmatpush.msra.mxu0 0.0
    %782 = vmatpush.msra.mxu0 0.0
    %783 = vmatpush.msra.mxu0 0.0
    %784 = vmatpush.msra.mxu0 0.0
    %785 = vmatpush.msra.mxu0 0.0
    %786 = vmatpush.msra.mxu0 0.0
    %787 = vmatpush.msra.mxu0 0.0
    %788 = vmatpush.msra.mxu0 %v758
    %789 = vmatpush.msra.mxu0 %v756
    %790 = vmatmul.f32.gmra.mxu0 %v769
    %v791 = vpop.f32.mrf.mxu0
    %v792 = vadd.f32 %v762, %v791
    %793 = vmatmul.f32.gmra.mxu0 %v772
    %v794 = vpop.f32.mrf.mxu0
    %v795 = vadd.f32 %v766, %v794
    %796 = vdwg.mxu0
    %797 = vmatpush.msra.mxu0 0.0
    %798 = vmatpush.msra.mxu0 0.0
    %799 = vmatpush.msra.mxu0 0.0
    %800 = vmatpush.msra.mxu0 0.0
    %801 = vmatpush.msra.mxu0 0.0
    %802 = vmatpush.msra.mxu0 0.0
    %803 = vmatpush.msra.mxu0 0.0
    %804 = vmatpush.msra.mxu0 0.0
    %805 = vmatpush.msra.mxu0 0.0
    %806 = vmatpush.msra.mxu0 0.0
    %807 = vmatpush.msra.mxu0 0.0
    %808 = vmatpush.msra.mxu0 0.0
    %809 = vmatpush.msra.mxu0 0.0
    %810 = vmatpush.msra.mxu0 0.0
    %811 = vmatpush.msra.mxu0 %v759
    %812 = vmatpush.msra.mxu0 %v757
    %813 = vmatmul.f32.gmra.mxu0 %v769
    %v814 = vpop.f32.mrf.mxu0
    %v815 = vadd.f32 %v762, %v814
    %816 = vmatmul.f32.gmra.mxu0 %v772
    %v817 = vpop.f32.mrf.mxu0
    %v818 = vadd.f32 %v766, %v817
    %819 = vdwg.mxu0
    %v820 = vtanh.pop %v792
    %v821 = vtanh.pop %v815
    %v822 = vtanh.pop %v795
    %v823 = vtanh.pop %v818
    %825 = vset.pattern.permute.xlu0 0
    %826 = vperm.xlu0 %825, %v727
    %v827 = vpop.permute.xlu0 %826
    %v830 = vsel %vm77, %v726, 0
    %832 = vmatpush.msra.mxu0 0.0
    %833 = vmatpush.msra.mxu0 0.0
    %834 = vmatpush.msra.mxu0 0.0
    %835 = vmatpush.msra.mxu0 0.0
    %836 = vmatpush.msra.mxu0 0.0
    %837 = vmatpush.msra.mxu0 0.0
    %838 = vmatpush.msra.mxu0 0.0
    %839 = vmatpush.msra.mxu0 0.0
    %840 = vmatpush.msra.mxu0 0.0
    %841 = vmatpush.msra.mxu0 0.0
    %842 = vmatpush.msra.mxu0 0.0
    %843 = vmatpush.msra.mxu0 0.0
    %844 = vmatpush.msra.mxu0 0.0
    %845 = vmatpush.msra.mxu0 0.0
    %846 = vmatpush.msra.mxu0 %v822
    %847 = vmatpush.msra.mxu0 %v820
    %848 = vmatmul.f32.gmra.mxu0 %v830
    %v849 = vpop.f32.mrf.mxu0
    %v850 = vadd.f32 %v827, %v849
    %851 = vdwg.mxu0
    %852 = vmatpush.msra.mxu0 0.0
    %853 = vmatpush.msra.mxu0 0.0
    %854 = vmatpush.msra.mxu0 0.0
    %855 = vmatpush.msra.mxu0 0.0
    %856 = vmatpush.msra.mxu0 0.0
    %857 = vmatpush.msra.mxu0 0.0
    %858 = vmatpush.msra.mxu0 0.0
    %859 = vmatpush.msra.mxu0 0.0
    %860 = vmatpush.msra.mxu0 0.0
    %861 = vmatpush.msra.mxu0 0.0
    %862 = vmatpush.msra.mxu0 0.0
    %863 = vmatpush.msra.mxu0 0.0
    %864 = vmatpush.msra.mxu0 0.0
    %865 = vmatpush.msra.mxu0 0.0
    %866 = vmatpush.msra.mxu0 %v823
    %867 = vmatpush.msra.mxu0 %v821
    %868 = vmatmul.f32.gmra.mxu0 %v830
    %v869 = vpop.f32.mrf.mxu0
    %v870 = vadd.f32 %v827, %v869
    %871 = vdwg.mxu0
    %v872 = vmul.f32 %v850, 1.442695
    %v873 = vpow.pop %v872
    %v874 = vmul.f32 %v870, 1.442695
    %v875 = vpow.pop %v874
    %v876 = vmul.f32 %v756, %v756
    %v877 = vmul.f32 %v758, %v758
    %v878 = vsub.f32 1.0, %v876
    %v879 = vsub.f32 1.0, %v877
    %v881 = vsel %vm77, %v724, 0
    %v884 = vsel %vm77, %v725, 0
    %886 = vmatpush.msra.mxu0 0.0
    %887 = vmatpush.msra.mxu0 0.0
    %888 = vmatpush.msra.mxu0 0.0
    %889 = vmatpush.msra.mxu0 0.0
    %890 = vmatpush.msra.mxu0 0.0
    %891 = vmatpush.msra.mxu0 0.0
    %892 = vmatpush.msra.mxu0 0.0
    %893 = vmatpush.msra.mxu0 0.0
    %894 = vmatpush.msra.mxu0 0.0
    %895 = vmatpush.msra.mxu0 0.0
    %896 = vmatpush.msra.mxu0 0.0
    %897 = vmatpush.msra.mxu0 0.0
    %898 = vmatpush.msra.mxu0 0.0
    %899 = vmatpush.msra.mxu0 0.0
    %900 = vmatpush.msra.mxu0 %v879
    %901 = vmatpush.msra.mxu0 %v878
    %902 = vmatmul.f32.gmra.mxu0 %v881
    %v903 = vpop.f32.mrf.mxu0
    %v904 = vadd.f32 0.0, %v903
    %905 = vmatmul.f32.gmra.mxu0 %v884
    %v906 = vpop.f32.mrf.mxu0
    %v907 = vadd.f32 0.0, %v906
    %908 = vdwg.mxu0
    %v909 = vmul.f32 %v820, %v820
    %v910 = vmul.f32 %v822, %v822
    %v911 = vsub.f32 1.0, %v909
    %v912 = vsub.f32 1.0, %v910
    %v913 = vmul.f32 %v911, %v904
    %v914 = vmul.f32 %v912, %v907
    %915 = vmatpush.msra.mxu0 0.0
    %916 = vmatpush.msra.mxu0 0.0
    %917 = vmatpush.msra.mxu0 0.0
    %918 = vmatpush.msra.mxu0 0.0
    %919 = vmatpush.msra.mxu0 0.0
    %920 = vmatpush.msra.mxu0 0.0
    %921 = vmatpush.msra.mxu0 0.0
    %922 = vmatpush.msra.mxu0 0.0
    %923 = vmatpush.msra.mxu0 0.0
    %924 = vmatpush.msra.mxu0 0.0
    %925 = vmatpush.msra.mxu0 0.0
    %926 = vmatpush.msra.mxu0 0.0
    %927 = vmatpush.msra.mxu0 0.0
    %928 = vmatpush.msra.mxu0 0.0
    %929 = vmatpush.msra.mxu0 %v914
    %930 = vmatpush.msra.mxu0 %v913
    %931 = vmatmul.f32.gmra.mxu0 %v830
    %v932 = vpop.f32.mrf.mxu0
    %v933 = vadd.f32 0.0, %v932
    %934 = vdwg.mxu0
    %v937 = vrot.slane %v873, 1
    %v938 = vrot.slane %v875, 1
    %v941 = vmul.f32 %v488, %v937
    %v942 = vmul.f32 %v489, %v938
    %v944 = vrot.slane %v933, 1
    %v946 = vmul.f32 %v941, %v944
    %v947 = vadd.f32 %v933, %v946
    %v948 = vadd.f32 %v850, %v941
    %v949 = vadd.f32 %v870, %v942
    %v950 = vld [vmem:[%s2 + $0x40] sm:$0xff]
    %v951 = vld [vmem:[%s2 + $0x48] sm:$0xff]
    %v952 = vld [vmem:[%s3 + $0x40] sm:$0xff]
    %v953 = vld [vmem:[%s3 + $0x48] sm:$0xff]
    %v954 = vld [vmem:[%s4 + $0x40] sm:$0xff]
    %v955 = vld [vmem:[%s4 + $0x48] sm:$0xff]
    %v956 = vld [vmem:[%s5 + $0x20] sm:$0xff]
    %v957 = vld [vmem:[%s6 + $0x20] sm:$0xff]
    %959 = vset.pattern.permute.xlu0 0
    %960 = vperm.xlu0 %959, %v950
    %v961 = vpop.permute.xlu0 %960
    %964 = vset.pattern.permute.xlu0 0
    %965 = vperm.xlu0 %964, %v951
    %v966 = vpop.permute.xlu0 %965
    %v968 = vperm.slane %v948, 0
    %v969 = vperm.slane %v949, 0
    %v970 = vmul.f32 %v961, %v968
    %v971 = vmul.f32 %v961, %v969
    %v972 = vmul.f32 %v966, %v968
    %v973 = vmul.f32 %v966, %v969
    %974 = vset.pattern.permute.xlu0 1
    %975 = vperm.xlu0 %974, %v950
    %v976 = vpop.permute.xlu0 %975
    %978 = vset.pattern.permute.xlu0 1
    %979 = vperm.xlu0 %978, %v951
    %v980 = vpop.permute.xlu0 %979
    %v982 = vadd.f32 %v970, %v976
    %v983 = vadd.f32 %v971, %v976
    %v984 = vadd.f32 %v972, %v980
    %v985 = vadd.f32 %v973, %v980
    %v986 = vtanh.pop %v982
    %v987 = vtanh.pop %v983
    %v988 = vtanh.pop %v984
    %v989 = vtanh.pop %v985
    %990 = vset.pattern.permute.xlu0 2
    %991 = vperm.xlu0 %990, %v950
    %v992 = vpop.permute.xlu0 %991
    %994 = vset.pattern.permute.xlu0 2
    %995 = vperm.xlu0 %994, %v951
    %v996 = vpop.permute.xlu0 %995
    %v999 = vsel %vm77, %v952, 0
    %v1002 = vsel %vm77, %v953, 0
    %1004 = vmatpush.msra.mxu0 0.0
    %1005 = vmatpush.msra.mxu0 0.0
    %1006 = vmatpush.msra.mxu0 0.0
    %1007 = vmatpush.msra.mxu0 0.0
    %1008 = vmatpush.msra.mxu0 0.0
    %1009 = vmatpush.msra.mxu0 0.0
    %1010 = vmatpush.msra.mxu0 0.0
    %1011 = vmatpush.msra.mxu0 0.0
    %1012 = vmatpush.msra.mxu0 0.0
    %1013 = vmatpush.msra.mxu0 0.0
    %1014 = vmatpush.msra.mxu0 0.0
    %1015 = vmatpush.msra.mxu0 0.0
    %1016 = vmatpush.msra.mxu0 0.0
    %1017 = vmatpush.msra.mxu0 0.0
    %1018 = vmatpush.msra.mxu0 %v988
    %1019 = vmatpush.msra.mxu0 %v986
    %1020 = vmatmul.f32.gmra.mxu0 %v999
    %v1021 = vpop.f32.mrf.mxu0
    %v1022 = vadd.f32 %v992, %v1021
    %1023 = vmatmul.f32.gmra.mxu0 %v1002
    %v1024 = vpop.f32.mrf.mxu0
    %v1025 = vadd.f32 %v996, %v1024
    %1026 = vdwg.mxu0
    %1027 = vmatpush.msra.mxu0 0.0
    %1028 = vmatpush.msra.mxu0 0.0
    %1029 = vmatpush.msra.mxu0 0.0
    %1030 = vmatpush.msra.mxu0 0.0
    %1031 = vmatpush.msra.mxu0 0.0
    %1032 = vmatpush.msra.mxu0 0.0
    %1033 = vmatpush.msra.mxu0 0.0
    %1034 = vmatpush.msra.mxu0 0.0
    %1035 = vmatpush.msra.mxu0 0.0
    %1036 = vmatpush.msra.mxu0 0.0
    %1037 = vmatpush.msra.mxu0 0.0
    %1038 = vmatpush.msra.mxu0 0.0
    %1039 = vmatpush.msra.mxu0 0.0
    %1040 = vmatpush.msra.mxu0 0.0
    %1041 = vmatpush.msra.mxu0 %v989
    %1042 = vmatpush.msra.mxu0 %v987
    %1043 = vmatmul.f32.gmra.mxu0 %v999
    %v1044 = vpop.f32.mrf.mxu0
    %v1045 = vadd.f32 %v992, %v1044
    %1046 = vmatmul.f32.gmra.mxu0 %v1002
    %v1047 = vpop.f32.mrf.mxu0
    %v1048 = vadd.f32 %v996, %v1047
    %1049 = vdwg.mxu0
    %v1050 = vtanh.pop %v1022
    %v1051 = vtanh.pop %v1045
    %v1052 = vtanh.pop %v1025
    %v1053 = vtanh.pop %v1048
    %1055 = vset.pattern.permute.xlu0 0
    %1056 = vperm.xlu0 %1055, %v957
    %v1057 = vpop.permute.xlu0 %1056
    %v1060 = vsel %vm77, %v956, 0
    %1062 = vmatpush.msra.mxu0 0.0
    %1063 = vmatpush.msra.mxu0 0.0
    %1064 = vmatpush.msra.mxu0 0.0
    %1065 = vmatpush.msra.mxu0 0.0
    %1066 = vmatpush.msra.mxu0 0.0
    %1067 = vmatpush.msra.mxu0 0.0
    %1068 = vmatpush.msra.mxu0 0.0
    %1069 = vmatpush.msra.mxu0 0.0
    %1070 = vmatpush.msra.mxu0 0.0
    %1071 = vmatpush.msra.mxu0 0.0
    %1072 = vmatpush.msra.mxu0 0.0
    %1073 = vmatpush.msra.mxu0 0.0
    %1074 = vmatpush.msra.mxu0 0.0
    %1075 = vmatpush.msra.mxu0 0.0
    %1076 = vmatpush.msra.mxu0 %v1052
    %1077 = vmatpush.msra.mxu0 %v1050
    %1078 = vmatmul.f32.gmra.mxu0 %v1060
    %v1079 = vpop.f32.mrf.mxu0
    %v1080 = vadd.f32 %v1057, %v1079
    %1081 = vdwg.mxu0
    %1082 = vmatpush.msra.mxu0 0.0
    %1083 = vmatpush.msra.mxu0 0.0
    %1084 = vmatpush.msra.mxu0 0.0
    %1085 = vmatpush.msra.mxu0 0.0
    %1086 = vmatpush.msra.mxu0 0.0
    %1087 = vmatpush.msra.mxu0 0.0
    %1088 = vmatpush.msra.mxu0 0.0
    %1089 = vmatpush.msra.mxu0 0.0
    %1090 = vmatpush.msra.mxu0 0.0
    %1091 = vmatpush.msra.mxu0 0.0
    %1092 = vmatpush.msra.mxu0 0.0
    %1093 = vmatpush.msra.mxu0 0.0
    %1094 = vmatpush.msra.mxu0 0.0
    %1095 = vmatpush.msra.mxu0 0.0
    %1096 = vmatpush.msra.mxu0 %v1053
    %1097 = vmatpush.msra.mxu0 %v1051
    %1098 = vmatmul.f32.gmra.mxu0 %v1060
    %v1099 = vpop.f32.mrf.mxu0
    %v1100 = vadd.f32 %v1057, %v1099
    %1101 = vdwg.mxu0
    %v1102 = vmul.f32 %v1080, 1.442695
    %v1103 = vpow.pop %v1102
    %v1104 = vmul.f32 %v1100, 1.442695
    %v1105 = vpow.pop %v1104
    %v1106 = vmul.f32 %v986, %v986
    %v1107 = vmul.f32 %v988, %v988
    %v1108 = vsub.f32 1.0, %v1106
    %v1109 = vsub.f32 1.0, %v1107
    %v1111 = vsel %vm77, %v954, 0
    %v1114 = vsel %vm77, %v955, 0
    %1116 = vmatpush.msra.mxu0 0.0
    %1117 = vmatpush.msra.mxu0 0.0
    %1118 = vmatpush.msra.mxu0 0.0
    %1119 = vmatpush.msra.mxu0 0.0
    %1120 = vmatpush.msra.mxu0 0.0
    %1121 = vmatpush.msra.mxu0 0.0
    %1122 = vmatpush.msra.mxu0 0.0
    %1123 = vmatpush.msra.mxu0 0.0
    %1124 = vmatpush.msra.mxu0 0.0
    %1125 = vmatpush.msra.mxu0 0.0
    %1126 = vmatpush.msra.mxu0 0.0
    %1127 = vmatpush.msra.mxu0 0.0
    %1128 = vmatpush.msra.mxu0 0.0
    %1129 = vmatpush.msra.mxu0 0.0
    %1130 = vmatpush.msra.mxu0 %v1109
    %1131 = vmatpush.msra.mxu0 %v1108
    %1132 = vmatmul.f32.gmra.mxu0 %v1111
    %v1133 = vpop.f32.mrf.mxu0
    %v1134 = vadd.f32 0.0, %v1133
    %1135 = vmatmul.f32.gmra.mxu0 %v1114
    %v1136 = vpop.f32.mrf.mxu0
    %v1137 = vadd.f32 0.0, %v1136
    %1138 = vdwg.mxu0
    %v1139 = vmul.f32 %v1050, %v1050
    %v1140 = vmul.f32 %v1052, %v1052
    %v1141 = vsub.f32 1.0, %v1139
    %v1142 = vsub.f32 1.0, %v1140
    %v1143 = vmul.f32 %v1141, %v1134
    %v1144 = vmul.f32 %v1142, %v1137
    %1145 = vmatpush.msra.mxu0 0.0
    %1146 = vmatpush.msra.mxu0 0.0
    %1147 = vmatpush.msra.mxu0 0.0
    %1148 = vmatpush.msra.mxu0 0.0
    %1149 = vmatpush.msra.mxu0 0.0
    %1150 = vmatpush.msra.mxu0 0.0
    %1151 = vmatpush.msra.mxu0 0.0
    %1152 = vmatpush.msra.mxu0 0.0
    %1153 = vmatpush.msra.mxu0 0.0
    %1154 = vmatpush.msra.mxu0 0.0
    %1155 = vmatpush.msra.mxu0 0.0
    %1156 = vmatpush.msra.mxu0 0.0
    %1157 = vmatpush.msra.mxu0 0.0
    %1158 = vmatpush.msra.mxu0 0.0
    %1159 = vmatpush.msra.mxu0 %v1144
    %1160 = vmatpush.msra.mxu0 %v1143
    %1161 = vmatmul.f32.gmra.mxu0 %v1060
    %v1162 = vpop.f32.mrf.mxu0
    %v1163 = vadd.f32 0.0, %v1162
    %1164 = vdwg.mxu0
    %v1167 = vrot.slane %v1103, 1
    %v1168 = vrot.slane %v1105, 1
    %v1171 = vmul.f32 %v718, %v1167
    %v1172 = vmul.f32 %v719, %v1168
    %v1174 = vrot.slane %v1163, 1
    %v1176 = vmul.f32 %v1171, %v1174
    %v1177 = vadd.f32 %v1163, %v1176
    %v1178 = vadd.f32 %v1080, %v1171
    %v1179 = vadd.f32 %v1100, %v1172
    %v1180 = vld [vmem:[%s2 + $0x50] sm:$0xff]
    %v1181 = vld [vmem:[%s2 + $0x58] sm:$0xff]
    %v1182 = vld [vmem:[%s3 + $0x50] sm:$0xff]
    %v1183 = vld [vmem:[%s3 + $0x58] sm:$0xff]
    %v1184 = vld [vmem:[%s4 + $0x50] sm:$0xff]
    %v1185 = vld [vmem:[%s4 + $0x58] sm:$0xff]
    %v1186 = vld [vmem:[%s5 + $0x28] sm:$0xff]
    %v1187 = vld [vmem:[%s6 + $0x28] sm:$0xff]
    %1189 = vset.pattern.permute.xlu0 0
    %1190 = vperm.xlu0 %1189, %v1180
    %v1191 = vpop.permute.xlu0 %1190
    %1194 = vset.pattern.permute.xlu0 0
    %1195 = vperm.xlu0 %1194, %v1181
    %v1196 = vpop.permute.xlu0 %1195
    %v1198 = vperm.slane %v1178, 0
    %v1199 = vperm.slane %v1179, 0
    %v1200 = vmul.f32 %v1191, %v1198
    %v1201 = vmul.f32 %v1191, %v1199
    %v1202 = vmul.f32 %v1196, %v1198
    %v1203 = vmul.f32 %v1196, %v1199
    %1204 = vset.pattern.permute.xlu0 1
    %1205 = vperm.xlu0 %1204, %v1180
    %v1206 = vpop.permute.xlu0 %1205
    %1208 = vset.pattern.permute.xlu0 1
    %1209 = vperm.xlu0 %1208, %v1181
    %v1210 = vpop.permute.xlu0 %1209
    %v1212 = vadd.f32 %v1200, %v1206
    %v1213 = vadd.f32 %v1201, %v1206
    %v1214 = vadd.f32 %v1202, %v1210
    %v1215 = vadd.f32 %v1203, %v1210
    %v1216 = vtanh.pop %v1212
    %v1217 = vtanh.pop %v1213
    %v1218 = vtanh.pop %v1214
    %v1219 = vtanh.pop %v1215
    %1220 = vset.pattern.permute.xlu0 2
    %1221 = vperm.xlu0 %1220, %v1180
    %v1222 = vpop.permute.xlu0 %1221
    %1224 = vset.pattern.permute.xlu0 2
    %1225 = vperm.xlu0 %1224, %v1181
    %v1226 = vpop.permute.xlu0 %1225
    %v1229 = vsel %vm77, %v1182, 0
    %v1232 = vsel %vm77, %v1183, 0
    %1234 = vmatpush.msra.mxu0 0.0
    %1235 = vmatpush.msra.mxu0 0.0
    %1236 = vmatpush.msra.mxu0 0.0
    %1237 = vmatpush.msra.mxu0 0.0
    %1238 = vmatpush.msra.mxu0 0.0
    %1239 = vmatpush.msra.mxu0 0.0
    %1240 = vmatpush.msra.mxu0 0.0
    %1241 = vmatpush.msra.mxu0 0.0
    %1242 = vmatpush.msra.mxu0 0.0
    %1243 = vmatpush.msra.mxu0 0.0
    %1244 = vmatpush.msra.mxu0 0.0
    %1245 = vmatpush.msra.mxu0 0.0
    %1246 = vmatpush.msra.mxu0 0.0
    %1247 = vmatpush.msra.mxu0 0.0
    %1248 = vmatpush.msra.mxu0 %v1218
    %1249 = vmatpush.msra.mxu0 %v1216
    %1250 = vmatmul.f32.gmra.mxu0 %v1229
    %v1251 = vpop.f32.mrf.mxu0
    %v1252 = vadd.f32 %v1222, %v1251
    %1253 = vmatmul.f32.gmra.mxu0 %v1232
    %v1254 = vpop.f32.mrf.mxu0
    %v1255 = vadd.f32 %v1226, %v1254
    %1256 = vdwg.mxu0
    %1257 = vmatpush.msra.mxu0 0.0
    %1258 = vmatpush.msra.mxu0 0.0
    %1259 = vmatpush.msra.mxu0 0.0
    %1260 = vmatpush.msra.mxu0 0.0
    %1261 = vmatpush.msra.mxu0 0.0
    %1262 = vmatpush.msra.mxu0 0.0
    %1263 = vmatpush.msra.mxu0 0.0
    %1264 = vmatpush.msra.mxu0 0.0
    %1265 = vmatpush.msra.mxu0 0.0
    %1266 = vmatpush.msra.mxu0 0.0
    %1267 = vmatpush.msra.mxu0 0.0
    %1268 = vmatpush.msra.mxu0 0.0
    %1269 = vmatpush.msra.mxu0 0.0
    %1270 = vmatpush.msra.mxu0 0.0
    %1271 = vmatpush.msra.mxu0 %v1219
    %1272 = vmatpush.msra.mxu0 %v1217
    %1273 = vmatmul.f32.gmra.mxu0 %v1229
    %v1274 = vpop.f32.mrf.mxu0
    %v1275 = vadd.f32 %v1222, %v1274
    %1276 = vmatmul.f32.gmra.mxu0 %v1232
    %v1277 = vpop.f32.mrf.mxu0
    %v1278 = vadd.f32 %v1226, %v1277
    %1279 = vdwg.mxu0
    %v1280 = vtanh.pop %v1252
    %v1281 = vtanh.pop %v1275
    %v1282 = vtanh.pop %v1255
    %v1283 = vtanh.pop %v1278
    %1285 = vset.pattern.permute.xlu0 0
    %1286 = vperm.xlu0 %1285, %v1187
    %v1287 = vpop.permute.xlu0 %1286
    %v1290 = vsel %vm77, %v1186, 0
    %1292 = vmatpush.msra.mxu0 0.0
    %1293 = vmatpush.msra.mxu0 0.0
    %1294 = vmatpush.msra.mxu0 0.0
    %1295 = vmatpush.msra.mxu0 0.0
    %1296 = vmatpush.msra.mxu0 0.0
    %1297 = vmatpush.msra.mxu0 0.0
    %1298 = vmatpush.msra.mxu0 0.0
    %1299 = vmatpush.msra.mxu0 0.0
    %1300 = vmatpush.msra.mxu0 0.0
    %1301 = vmatpush.msra.mxu0 0.0
    %1302 = vmatpush.msra.mxu0 0.0
    %1303 = vmatpush.msra.mxu0 0.0
    %1304 = vmatpush.msra.mxu0 0.0
    %1305 = vmatpush.msra.mxu0 0.0
    %1306 = vmatpush.msra.mxu0 %v1282
    %1307 = vmatpush.msra.mxu0 %v1280
    %1308 = vmatmul.f32.gmra.mxu0 %v1290
    %v1309 = vpop.f32.mrf.mxu0
    %v1310 = vadd.f32 %v1287, %v1309
    %1311 = vdwg.mxu0
    %1312 = vmatpush.msra.mxu0 0.0
    %1313 = vmatpush.msra.mxu0 0.0
    %1314 = vmatpush.msra.mxu0 0.0
    %1315 = vmatpush.msra.mxu0 0.0
    %1316 = vmatpush.msra.mxu0 0.0
    %1317 = vmatpush.msra.mxu0 0.0
    %1318 = vmatpush.msra.mxu0 0.0
    %1319 = vmatpush.msra.mxu0 0.0
    %1320 = vmatpush.msra.mxu0 0.0
    %1321 = vmatpush.msra.mxu0 0.0
    %1322 = vmatpush.msra.mxu0 0.0
    %1323 = vmatpush.msra.mxu0 0.0
    %1324 = vmatpush.msra.mxu0 0.0
    %1325 = vmatpush.msra.mxu0 0.0
    %1326 = vmatpush.msra.mxu0 %v1283
    %1327 = vmatpush.msra.mxu0 %v1281
    %1328 = vmatmul.f32.gmra.mxu0 %v1290
    %v1329 = vpop.f32.mrf.mxu0
    %v1330 = vadd.f32 %v1287, %v1329
    %1331 = vdwg.mxu0
    %v1332 = vmul.f32 %v1310, 1.442695
    %v1333 = vpow.pop %v1332
    %v1334 = vmul.f32 %v1330, 1.442695
    %v1335 = vpow.pop %v1334
    %v1336 = vmul.f32 %v1216, %v1216
    %v1337 = vmul.f32 %v1218, %v1218
    %v1338 = vsub.f32 1.0, %v1336
    %v1339 = vsub.f32 1.0, %v1337
    %v1341 = vsel %vm77, %v1184, 0
    %v1344 = vsel %vm77, %v1185, 0
    %1346 = vmatpush.msra.mxu0 0.0
    %1347 = vmatpush.msra.mxu0 0.0
    %1348 = vmatpush.msra.mxu0 0.0
    %1349 = vmatpush.msra.mxu0 0.0
    %1350 = vmatpush.msra.mxu0 0.0
    %1351 = vmatpush.msra.mxu0 0.0
    %1352 = vmatpush.msra.mxu0 0.0
    %1353 = vmatpush.msra.mxu0 0.0
    %1354 = vmatpush.msra.mxu0 0.0
    %1355 = vmatpush.msra.mxu0 0.0
    %1356 = vmatpush.msra.mxu0 0.0
    %1357 = vmatpush.msra.mxu0 0.0
    %1358 = vmatpush.msra.mxu0 0.0
    %1359 = vmatpush.msra.mxu0 0.0
    %1360 = vmatpush.msra.mxu0 %v1339
    %1361 = vmatpush.msra.mxu0 %v1338
    %1362 = vmatmul.f32.gmra.mxu0 %v1341
    %v1363 = vpop.f32.mrf.mxu0
    %v1364 = vadd.f32 0.0, %v1363
    %1365 = vmatmul.f32.gmra.mxu0 %v1344
    %v1366 = vpop.f32.mrf.mxu0
    %v1367 = vadd.f32 0.0, %v1366
    %1368 = vdwg.mxu0
    %v1369 = vmul.f32 %v1280, %v1280
    %v1370 = vmul.f32 %v1282, %v1282
    %v1371 = vsub.f32 1.0, %v1369
    %v1372 = vsub.f32 1.0, %v1370
    %v1373 = vmul.f32 %v1371, %v1364
    %v1374 = vmul.f32 %v1372, %v1367
    %1375 = vmatpush.msra.mxu0 0.0
    %1376 = vmatpush.msra.mxu0 0.0
    %1377 = vmatpush.msra.mxu0 0.0
    %1378 = vmatpush.msra.mxu0 0.0
    %1379 = vmatpush.msra.mxu0 0.0
    %1380 = vmatpush.msra.mxu0 0.0
    %1381 = vmatpush.msra.mxu0 0.0
    %1382 = vmatpush.msra.mxu0 0.0
    %1383 = vmatpush.msra.mxu0 0.0
    %1384 = vmatpush.msra.mxu0 0.0
    %1385 = vmatpush.msra.mxu0 0.0
    %1386 = vmatpush.msra.mxu0 0.0
    %1387 = vmatpush.msra.mxu0 0.0
    %1388 = vmatpush.msra.mxu0 0.0
    %1389 = vmatpush.msra.mxu0 %v1374
    %1390 = vmatpush.msra.mxu0 %v1373
    %1391 = vmatmul.f32.gmra.mxu0 %v1290
    %v1392 = vpop.f32.mrf.mxu0
    %v1393 = vadd.f32 0.0, %v1392
    %1394 = vdwg.mxu0
    %v1397 = vrot.slane %v1333, 1
    %v1398 = vrot.slane %v1335, 1
    %v1401 = vmul.f32 %v948, %v1397
    %v1402 = vmul.f32 %v949, %v1398
    %v1404 = vrot.slane %v1393, 1
    %v1406 = vmul.f32 %v1401, %v1404
    %v1407 = vadd.f32 %v1393, %v1406
    %v1408 = vadd.f32 %v1310, %v1401
    %v1409 = vadd.f32 %v1330, %v1402
    %v1410 = vsub.f32 %v1408, %v1409
    %v1411 = vmul.f32 %v1410, -2.0
    %v1412 = vsub.f32 %v1178, %v1179
    %v1413 = vmul.f32 %v1412, -2.0
    %v1415 = vrot.slane %v1411, 7
    %v1417 = vmul.f32 %v1333, %v1415
    %v1418 = vmul.f32 %v1407, %v1411
    %v1419 = vadd.f32 %v1418, %v1413
    %v1420 = vmul.f32 %v1177, %v1419
    %v1422 = vrot.slane %v1420, 7
    %v1424 = vadd.f32 %v1417, %v1422
    %v1426 = vrot.slane %v1419, 7
    %v1428 = vmul.f32 %v1103, %v1426
    %v1429 = vmul.f32 %v873, %v1424
    %v1431 = vrot.slane %v1424, 1
    %v1433 = vmul.f32 %v947, %v1431
    %v1435 = vrot.slane %v1428, 1
    %v1437 = vadd.f32 %v1433, %v1435
    %v1438 = vmul.f32 %v717, %v1437
    %v1440 = vrot.slane %v1438, 7
    %v1442 = vadd.f32 %v1429, %v1440
    %v1444 = vrot.slane %v1437, 7
    %v1446 = vmul.f32 %v643, %v1444
    %v1447 = vmul.f32 %v413, %v1442
    %v1449 = vrot.slane %v1442, 1
    %v1451 = vmul.f32 %v487, %v1449
    %v1453 = vrot.slane %v1446, 1
    %v1455 = vadd.f32 %v1451, %v1453
    %v1456 = vmul.f32 %v251, %v1455
    %v1458 = vrot.slane %v1456, 7
    %v1460 = vadd.f32 %v1447, %v1458
    %v1462 = vrot.slane %v1455, 7
    %v1464 = vmul.f32 %v183, %v1462
    %v1466 = vrot.slane %v1460, 1
    %vm1468 = vcmask 1040384
    %v1469 = vsel %vm1468, %v1466, %v1464
    %1470 = vst [vmem:[#allocation2] sm:$0x3] %v1469
    // Predicated region
    $region30: #{tpu_custom_call.1} parent=1 // pred_check
      _
    $region31: #{tpu_custom_call.1} parent=1 // pred_check_branch
      %1472 = sbr.rel (0) target = $region33
    $region32: #{tpu_custom_call.1} parent=1 // pred_region
      %1474 = vsyncadd [#allocation3], 0
      %s1476 = sshll.u32 [#allocation2], 4
      %s1477 = int_to_ptr.vmem [resolvable:$true] %s1476
      %s1478 = sshll.u32 %s7, 4
      %s1479 = int_to_ptr.hbm [resolvable:$true] %s1478
      %1481 = dma.vmem_to_hbm [thread:$0]  %s1477, 32, %s1479, [#allocation3]
    $region33: #{tpu_custom_call.1} parent=1 // pred_fallthru
      _
    // Predicated region
    $region34: #{tpu_custom_call.1} parent=1 // pred_check
      _
    $region35: #{tpu_custom_call.1} parent=1 // pred_check_branch
      %1483 = sbr.rel (0) target = $region37
    $region36: #{tpu_custom_call.1} parent=1 // pred_region
      %1485 = dma.done [#allocation3], 32
    $region37: #{tpu_custom_call.1} parent=1 // pred_fallthru
      _
    %1486 = vsyncpa [#allocation3], 1

</llo_original>
